<compile_context>
chip_gen: v6e
topology: v6e:2x2x1
jax: 0.10.0
libtpu: 0.0.40
codegen_flags: <defaults>
</compile_context>

<pallas_src>
import jax
import jax.numpy as jnp
from jax.experimental import pallas as pl
from jax.experimental.pallas import tpu as pltpu

OBS = 6
NUM_ACTIONS = 3
INPUT_SIZE = OBS * NUM_ACTIONS            # 18
HIDDEN = 256
NUM_LAYERS = 2
OUT = 6

LANE = 128
X_PAD = LANE                              # gated input padded 18 -> 128 lanes
OUT_PAD = LANE                            # fc head padded 6 -> 128 lanes


# --------------------------------------------------------------------------- #
# Kernel: whole T-step sequence in one invocation.
# --------------------------------------------------------------------------- #
def rnn_state_kernel(x_ref, h0_ref,
                     wih0_ref, whh0_ref, b0_ref,
                     wih1_ref, whh1_ref, b1_ref,
                     wfc_ref, bfc_ref,
                     pred_ref, hout_ref,
                     xw0_ref, h2all_ref):
    T = x_ref.shape[0]

    # Hoisted layer-0 input projection: one batched (T,128)@(128,256) matmul.
    xw0_ref[...] = jnp.dot(x_ref[...].astype(jnp.bfloat16), wih0_ref[...],
                           preferred_element_type=jnp.float32) + b0_ref[...]

    whh0 = whh0_ref[...]
    wih1 = wih1_ref[...]
    whh1 = whh1_ref[...]
    b1 = b1_ref[...]

    # Recurrent carries live in vregs, bf16 (they are re-cast to bf16 for the
    # next matmul anyway).
    h1_0 = h0_ref[0:1, :].astype(jnp.bfloat16)
    h2_0 = h0_ref[1:2, :].astype(jnp.bfloat16)

    def step(t, carry):
        h1_prev, h2_prev = carry                                  # bf16 (1,256)
        # Layer 0: only the recurrent dot stays on the serial chain.
        z0 = xw0_ref[pl.ds(t, 1), :] + jnp.dot(
            h1_prev, whh0, preferred_element_type=jnp.float32)
        h1_f32 = jnp.tanh(z0)
        h1 = h1_f32.astype(jnp.bfloat16)
        # Layer 1: two accumulating dots into one f32 accumulator (no concat).
        z1 = (jnp.dot(h1, wih1, preferred_element_type=jnp.float32)
              + jnp.dot(h2_prev, whh1, preferred_element_type=jnp.float32)
              + b1)
        h2_f32 = jnp.tanh(z1)
        # Stage layer-1 activations for the hoisted fc matmul.
        h2all_ref[pl.ds(t, 1), :] = h2_f32
        return h1, h2_f32.astype(jnp.bfloat16)

    h1_last, h2_last = jax.lax.fori_loop(0, T, step, (h1_0, h2_0), unroll=True)

    # Hoisted fc head: one lane-dense (T,256)@(256,128) matmul + bias.
    pred_ref[...] = jnp.dot(h2all_ref[...].astype(jnp.bfloat16), wfc_ref[...],
                            preferred_element_type=jnp.float32) + bfc_ref[...]

    # Write the recurrent carry back exactly once.
    hout_ref[0:1, :] = h1_last.astype(jnp.float32)
    hout_ref[1:2, :] = h2_last.astype(jnp.float32)


# --------------------------------------------------------------------------- #
# Host-side glue
# --------------------------------------------------------------------------- #
def gate_inputs(obs_seq, act_onehot):
    """Place each 6-dim observation into the action-selected 6-wide slot.

    Equivalent to the torch if/elif branches when `act_onehot` is exactly
    one-hot. Vectorized once over the whole sequence."""
    T = obs_seq.shape[0]
    gated = jnp.einsum("ta,tf->taf", act_onehot.astype(jnp.float32),
                       obs_seq.astype(jnp.float32)).reshape(T, INPUT_SIZE)
    return jnp.zeros((T, X_PAD), jnp.float32).at[:, :INPUT_SIZE].set(gated)


def rnn_state_forward(obs_seq, act_onehot, hiddenstate, p):
    """obs_seq (T, 6), act_onehot (T, 3) one-hot, hiddenstate (2, 256).

    Returns (predictions (T, 6), new hidden state (2, 256))."""
    T = obs_seq.shape[0]
    x = gate_inputs(obs_seq, act_onehot)

    def full(shape):
        nd = len(shape)
        return pl.BlockSpec(shape, lambda i, _nd=nd: (0,) * _nd)

    grid_spec = pltpu.PrefetchScalarGridSpec(
        num_scalar_prefetch=0,
        grid=(1,),                                   # whole sequence, one step
        in_specs=[
            full((T, X_PAD)),                        # gated, padded inputs
            full((NUM_LAYERS, HIDDEN)),              # initial hidden state
            full((X_PAD, HIDDEN)),                   # W_ih0 (padded rows)
            full((HIDDEN, HIDDEN)),                  # W_hh0
            full((1, HIDDEN)),                       # b0 = b_ih0 + b_hh0
            full((HIDDEN, HIDDEN)),                  # W_ih1
            full((HIDDEN, HIDDEN)),                  # W_hh1
            full((1, HIDDEN)),                       # b1 = b_ih1 + b_hh1
            full((HIDDEN, OUT_PAD)),                 # padded W_fc
            full((1, OUT_PAD)),                      # padded b_fc
        ],
        out_specs=(
            full((T, OUT_PAD)),                      # lane-dense predictions
            full((NUM_LAYERS, HIDDEN)),              # new hidden state
        ),
        scratch_shapes=[
            pltpu.VMEM((T, HIDDEN), jnp.float32),    # hoisted layer-0 GEMM
            pltpu.VMEM((T, HIDDEN), jnp.float32),    # stacked layer-1 states
        ],
    )

    pred_pad, h_new = pl.pallas_call(
        rnn_state_kernel,
        grid_spec=grid_spec,
        out_shape=(jax.ShapeDtypeStruct((T, OUT_PAD), jnp.float32),
                   jax.ShapeDtypeStruct((NUM_LAYERS, HIDDEN), jnp.float32)),
        compiler_params=pltpu.CompilerParams(
            dimension_semantics=("arbitrary",)),
    )(x, hiddenstate,
      p["w_ih0"], p["w_hh0"], p["b0"],
      p["w_ih1"], p["w_hh1"], p["b1"],
      p["w_fc"], p["b_fc"])

    return pred_pad[:, :OUT], h_new


# --------------------------------------------------------------------------- #
# Parameters (PyTorch layout -> padded / bf16 kernel layout)
# --------------------------------------------------------------------------- #
def init_params(key):
    """PyTorch-default init U(-1/sqrt(H), 1/sqrt(H)), stored in torch layout."""
    k = 1.0 / jnp.sqrt(jnp.float32(HIDDEN))
    keys = jax.random.split(key, 10)
    u = lambda kk, shape: jax.random.uniform(kk, shape, jnp.float32, -k, k)
    return dict(
        w_ih0=u(keys[0], (HIDDEN, INPUT_SIZE)),   # torch: (out, in)
        w_hh0=u(keys[1], (HIDDEN, HIDDEN)),
        b_ih0=u(keys[2], (HIDDEN,)),
        b_hh0=u(keys[3], (HIDDEN,)),
        w_ih1=u(keys[4], (HIDDEN, HIDDEN)),
        w_hh1=u(keys[5], (HIDDEN, HIDDEN)),
        b_ih1=u(keys[6], (HIDDEN,)),
        b_hh1=u(keys[7], (HIDDEN,)),
        w_fc=u(keys[8], (OUT, HIDDEN)),
        b_fc=u(keys[9], (OUT,)),
    )


def prepare_params(raw):
    """Transpose to (in, out), pad to lane-friendly shapes, cast weights to
    bf16 (MXU-native). Biases stay f32 (added post-MXU in f32)."""
    w_ih0 = jnp.zeros((X_PAD, HIDDEN), jnp.float32).at[:INPUT_SIZE].set(
        raw["w_ih0"].T)                                           # (128, 256)
    w_fc = jnp.zeros((HIDDEN, OUT_PAD), jnp.float32).at[:, :OUT].set(
        raw["w_fc"].T)                                            # (256, 128)
    b_fc = jnp.zeros((1, OUT_PAD), jnp.float32).at[0, :OUT].set(raw["b_fc"])
    return dict(
        w_ih0=w_ih0.astype(jnp.bfloat16),
        w_hh0=raw["w_hh0"].T.astype(jnp.bfloat16),
        b0=(raw["b_ih0"] + raw["b_hh0"]).reshape(1, HIDDEN),
        w_ih1=raw["w_ih1"].T.astype(jnp.bfloat16),
        w_hh1=raw["w_hh1"].T.astype(jnp.bfloat16),
        b1=(raw["b_ih1"] + raw["b_hh1"]).reshape(1, HIDDEN),
        w_fc=w_fc.astype(jnp.bfloat16),
        b_fc=b_fc,
    )


# --------------------------------------------------------------------------- #
# Pure-JAX reference (mirrors the bf16 operand rounding of the kernel)
# --------------------------------------------------------------------------- #
def rnn_state_forward_ref(obs_seq, act_onehot, hiddenstate, p):
    x = gate_inputs(obs_seq, act_onehot)                      # (T, 128)
    bf = lambda a: a.astype(jnp.bfloat16).astype(jnp.float32)
    wih0 = p["w_ih0"].astype(jnp.float32)
    whh0 = p["w_hh0"].astype(jnp.float32)
    wih1 = p["w_ih1"].astype(jnp.float32)
    whh1 = p["w_hh1"].astype(jnp.float32)
    wfc = p["w_fc"].astype(jnp.float32)

    xw0 = bf(x) @ wih0 + p["b0"]                              # (T, 256)

    def step(carry, xw0_t):
        h1_prev, h2_prev = carry
        z0 = xw0_t[None, :] + bf(h1_prev) @ whh0
        h1 = bf(jnp.tanh(z0))
        z1 = h1 @ wih1 + bf(h2_prev) @ whh1 + p["b1"]
        h2_f32 = jnp.tanh(z1)
        return (h1, bf(h2_f32)), h2_f32[0]

    (h1_last, h2_last), h2_all = jax.lax.scan(
        step, (hiddenstate[0:1], hiddenstate[1:2]), xw0)
    pred = bf(h2_all) @ wfc + p["b_fc"]
    h_new = jnp.concatenate([h1_last, h2_last], axis=0)
    return pred[:, :OUT], h_new


# --------------------------------------------------------------------------- #
if __name__ == "__main__":
    T = 8  # sequence of agent steps processed in a single pallas_call
    key = jax.random.PRNGKey(0)
    k_param, k_obs, k_act = jax.random.split(key, 3)

    raw = init_params(k_param)
    kparams = prepare_params(raw)

    obs_seq = jax.random.uniform(k_obs, (T, OBS), jnp.float32)
    act_idx = jax.random.randint(k_act, (T,), 0, NUM_ACTIONS)
    act_onehot = jax.nn.one_hot(act_idx, NUM_ACTIONS, dtype=jnp.float32)
    hiddenstate = jnp.zeros((NUM_LAYERS, HIDDEN), jnp.float32)  # module init

    fwd = jax.jit(rnn_state_forward)
    preds, h_new = fwd(obs_seq, act_onehot, hiddenstate, kparams)
    preds = jax.block_until_ready(preds)
    h_new = jax.block_until_ready(h_new)

    preds_ref, h_ref = rnn_state_forward_ref(obs_seq, act_onehot,
                                             hiddenstate, kparams)
    assert preds.shape == (T, OUT)
    assert h_new.shape == (NUM_LAYERS, HIDDEN)
    assert jnp.allclose(preds, preds_ref, atol=2e-3), \
        float(jnp.max(jnp.abs(preds - preds_ref)))
    assert jnp.allclose(h_new, h_ref, atol=2e-3), \
        float(jnp.max(jnp.abs(h_new - h_ref)))

    print("KERNEL_OK")
</pallas_src>

<mosaic_0001>
module attributes {stable_mosaic.version = 11 : i64} {
  func.func @rnn_state_kernel(%arg0: i32, %arg1: memref<8x128xf32, #tpu.memory_space<vmem>>, %arg2: memref<2x256xf32, #tpu.memory_space<vmem>>, %arg3: memref<128x256xbf16, #tpu.memory_space<vmem>>, %arg4: memref<256x256xbf16, #tpu.memory_space<vmem>>, %arg5: memref<1x256xf32, #tpu.memory_space<vmem>>, %arg6: memref<256x256xbf16, #tpu.memory_space<vmem>>, %arg7: memref<256x256xbf16, #tpu.memory_space<vmem>>, %arg8: memref<1x256xf32, #tpu.memory_space<vmem>>, %arg9: memref<256x128xbf16, #tpu.memory_space<vmem>>, %arg10: memref<1x128xf32, #tpu.memory_space<vmem>>, %arg11: memref<8x128xf32, #tpu.memory_space<vmem>>, %arg12: memref<2x256xf32, #tpu.memory_space<vmem>>, %arg13: memref<8x256xf32, #tpu.memory_space<vmem>>, %arg14: memref<8x256xf32, #tpu.memory_space<vmem>>) attributes {dimension_semantics = [#tpu.dimension_semantics<arbitrary>], iteration_bounds = array<i64: 1>, scalar_prefetch = 0 : i64, scratch_operands = 2 : i64, tpu.core_type = #tpu.core_type<tc>, window_params = [{pipeline_mode = #tpu.pipeline_mode<synchronous>, transform_indices = @transform_0, window_bounds = array<i64: 8, 128>}, {pipeline_mode = #tpu.pipeline_mode<synchronous>, transform_indices = @transform_1, window_bounds = array<i64: 2, 256>}, {pipeline_mode = #tpu.pipeline_mode<synchronous>, transform_indices = @transform_2, window_bounds = array<i64: 128, 256>}, {pipeline_mode = #tpu.pipeline_mode<synchronous>, transform_indices = @transform_3, window_bounds = array<i64: 256, 256>}, {pipeline_mode = #tpu.pipeline_mode<synchronous>, transform_indices = @transform_4, window_bounds = array<i64: 1, 256>}, {pipeline_mode = #tpu.pipeline_mode<synchronous>, transform_indices = @transform_5, window_bounds = array<i64: 256, 256>}, {pipeline_mode = #tpu.pipeline_mode<synchronous>, transform_indices = @transform_6, window_bounds = array<i64: 256, 256>}, {pipeline_mode = #tpu.pipeline_mode<synchronous>, transform_indices = @transform_7, window_bounds = array<i64: 1, 256>}, {pipeline_mode = #tpu.pipeline_mode<synchronous>, transform_indices = @transform_8, window_bounds = array<i64: 256, 128>}, {pipeline_mode = #tpu.pipeline_mode<synchronous>, transform_indices = @transform_9, window_bounds = array<i64: 1, 128>}, {pipeline_mode = #tpu.pipeline_mode<synchronous>, transform_indices = @transform_10, window_bounds = array<i64: 8, 128>}, {pipeline_mode = #tpu.pipeline_mode<synchronous>, transform_indices = @transform_11, window_bounds = array<i64: 2, 256>}]} {
    %c0 = arith.constant 0 : index
    %c0_0 = arith.constant 0 : index
    %0 = vector.load %arg1[%c0, %c0_0] : memref<8x128xf32, #tpu.memory_space<vmem>>, vector<8x128xf32>
    %1 = arith.truncf %0 : vector<8x128xf32> to vector<8x128xbf16>
    %c0_1 = arith.constant 0 : index
    %c0_2 = arith.constant 0 : index
    %2 = vector.load %arg3[%c0_1, %c0_2] : memref<128x256xbf16, #tpu.memory_space<vmem>>, vector<128x256xbf16>
    %cst = arith.constant dense<0.000000e+00> : vector<8x256xf32>
    %3 = tpu.matmul %1, %2, %cst {dimension_numbers = #tpu.dot_dimension_numbers<[1], [0], [0], [1], [0, 0, 1, 1], [], []>} : vector<8x128xbf16>, vector<128x256xbf16>, vector<8x256xf32> -> vector<8x256xf32>
    %c0_3 = arith.constant 0 : index
    %c0_4 = arith.constant 0 : index
    %4 = vector.load %arg5[%c0_3, %c0_4] : memref<1x256xf32, #tpu.memory_space<vmem>>, vector<1x256xf32>
    %5 = vector.broadcast %4 : vector<1x256xf32> to vector<8x256xf32>
    %6 = arith.addf %3, %5 : vector<8x256xf32>
    %c0_5 = arith.constant 0 : index
    %c0_6 = arith.constant 0 : index
    %7 = vector.load %arg13[%c0_5, %c0_6] : memref<8x256xf32, #tpu.memory_space<vmem>>, vector<8x256xf32>
    tpu.vector_store %arg13[%c0_5, %c0_6], %6 {strides = array<i32>} : memref<8x256xf32, #tpu.memory_space<vmem>>, vector<8x256xf32>,
    %c0_7 = arith.constant 0 : index
    %c0_8 = arith.constant 0 : index
    %8 = vector.load %arg4[%c0_7, %c0_8] : memref<256x256xbf16, #tpu.memory_space<vmem>>, vector<256x256xbf16>
    %c0_9 = arith.constant 0 : index
    %c0_10 = arith.constant 0 : index
    %9 = vector.load %arg6[%c0_9, %c0_10] : memref<256x256xbf16, #tpu.memory_space<vmem>>, vector<256x256xbf16>
    %c0_11 = arith.constant 0 : index
    %c0_12 = arith.constant 0 : index
    %10 = vector.load %arg7[%c0_11, %c0_12] : memref<256x256xbf16, #tpu.memory_space<vmem>>, vector<256x256xbf16>
    %c0_13 = arith.constant 0 : index
    %c0_14 = arith.constant 0 : index
    %11 = vector.load %arg8[%c0_13, %c0_14] : memref<1x256xf32, #tpu.memory_space<vmem>>, vector<1x256xf32>
    %c0_15 = arith.constant 0 : index
    %c0_16 = arith.constant 0 : index
    %12 = vector.load %arg2[%c0_15, %c0_16] : memref<2x256xf32, #tpu.memory_space<vmem>>, vector<1x256xf32>
    %13 = arith.truncf %12 : vector<1x256xf32> to vector<1x256xbf16>
    %c1 = arith.constant 1 : index
    %c0_17 = arith.constant 0 : index
    %14 = vector.load %arg2[%c1, %c0_17] : memref<2x256xf32, #tpu.memory_space<vmem>>, vector<1x256xf32>
    %15 = arith.truncf %14 : vector<1x256xf32> to vector<1x256xbf16>
    %c0_i32 = arith.constant 0 : i32
    %16 = arith.index_cast %c0_i32 : i32 to index
    %c0_18 = arith.constant 0 : index
    %17 = vector.load %arg13[%16, %c0_18] : memref<8x256xf32, #tpu.memory_space<vmem>>, vector<1x256xf32>
    %cst_19 = arith.constant dense<0.000000e+00> : vector<1x256xf32>
    %18 = tpu.matmul %13, %8, %cst_19 {dimension_numbers = #tpu.dot_dimension_numbers<[1], [0], [0], [1], [0, 0, 1, 1], [], []>} : vector<1x256xbf16>, vector<256x256xbf16>, vector<1x256xf32> -> vector<1x256xf32>
    %19 = arith.addf %17, %18 : vector<1x256xf32>
    %20 = math.tanh %19 : vector<1x256xf32>
    %21 = arith.truncf %20 : vector<1x256xf32> to vector<1x256xbf16>
    %cst_20 = arith.constant dense<0.000000e+00> : vector<1x256xf32>
    %22 = tpu.matmul %21, %9, %cst_20 {dimension_numbers = #tpu.dot_dimension_numbers<[1], [0], [0], [1], [0, 0, 1, 1], [], []>} : vector<1x256xbf16>, vector<256x256xbf16>, vector<1x256xf32> -> vector<1x256xf32>
    %cst_21 = arith.constant dense<0.000000e+00> : vector<1x256xf32>
    %23 = tpu.matmul %15, %10, %cst_21 {dimension_numbers = #tpu.dot_dimension_numbers<[1], [0], [0], [1], [0, 0, 1, 1], [], []>} : vector<1x256xbf16>, vector<256x256xbf16>, vector<1x256xf32> -> vector<1x256xf32>
    %24 = arith.addf %22, %23 : vector<1x256xf32>
    %25 = arith.addf %24, %11 : vector<1x256xf32>
    %26 = math.tanh %25 : vector<1x256xf32>
    %27 = arith.index_cast %c0_i32 : i32 to index
    %c0_22 = arith.constant 0 : index
    %28 = vector.load %arg14[%27, %c0_22] : memref<8x256xf32, #tpu.memory_space<vmem>>, vector<1x256xf32>
    tpu.vector_store %arg14[%27, %c0_22], %26 {strides = array<i32>} : memref<8x256xf32, #tpu.memory_space<vmem>>, vector<1x256xf32>,
    %29 = arith.truncf %26 : vector<1x256xf32> to vector<1x256xbf16>
    %c1_i32 = arith.constant 1 : i32
    %30 = arith.index_cast %c1_i32 : i32 to index
    %c0_23 = arith.constant 0 : index
    %31 = vector.load %arg13[%30, %c0_23] : memref<8x256xf32, #tpu.memory_space<vmem>>, vector<1x256xf32>
    %cst_24 = arith.constant dense<0.000000e+00> : vector<1x256xf32>
    %32 = tpu.matmul %21, %8, %cst_24 {dimension_numbers = #tpu.dot_dimension_numbers<[1], [0], [0], [1], [0, 0, 1, 1], [], []>} : vector<1x256xbf16>, vector<256x256xbf16>, vector<1x256xf32> -> vector<1x256xf32>
    %33 = arith.addf %31, %32 : vector<1x256xf32>
    %34 = math.tanh %33 : vector<1x256xf32>
    %35 = arith.truncf %34 : vector<1x256xf32> to vector<1x256xbf16>
    %cst_25 = arith.constant dense<0.000000e+00> : vector<1x256xf32>
    %36 = tpu.matmul %35, %9, %cst_25 {dimension_numbers = #tpu.dot_dimension_numbers<[1], [0], [0], [1], [0, 0, 1, 1], [], []>} : vector<1x256xbf16>, vector<256x256xbf16>, vector<1x256xf32> -> vector<1x256xf32>
    %cst_26 = arith.constant dense<0.000000e+00> : vector<1x256xf32>
    %37 = tpu.matmul %29, %10, %cst_26 {dimension_numbers = #tpu.dot_dimension_numbers<[1], [0], [0], [1], [0, 0, 1, 1], [], []>} : vector<1x256xbf16>, vector<256x256xbf16>, vector<1x256xf32> -> vector<1x256xf32>
    %38 = arith.addf %36, %37 : vector<1x256xf32>
    %39 = arith.addf %38, %11 : vector<1x256xf32>
    %40 = math.tanh %39 : vector<1x256xf32>
    %41 = arith.index_cast %c1_i32 : i32 to index
    %c0_27 = arith.constant 0 : index
    %42 = vector.load %arg14[%41, %c0_27] : memref<8x256xf32, #tpu.memory_space<vmem>>, vector<1x256xf32>
    tpu.vector_store %arg14[%41, %c0_27], %40 {strides = array<i32>} : memref<8x256xf32, #tpu.memory_space<vmem>>, vector<1x256xf32>,
    %43 = arith.truncf %40 : vector<1x256xf32> to vector<1x256xbf16>
    %c2_i32 = arith.constant 2 : i32
    %44 = arith.index_cast %c2_i32 : i32 to index
    %c0_28 = arith.constant 0 : index
    %45 = vector.load %arg13[%44, %c0_28] : memref<8x256xf32, #tpu.memory_space<vmem>>, vector<1x256xf32>
    %cst_29 = arith.constant dense<0.000000e+00> : vector<1x256xf32>
    %46 = tpu.matmul %35, %8, %cst_29 {dimension_numbers = #tpu.dot_dimension_numbers<[1], [0], [0], [1], [0, 0, 1, 1], [], []>} : vector<1x256xbf16>, vector<256x256xbf16>, vector<1x256xf32> -> vector<1x256xf32>
    %47 = arith.addf %45, %46 : vector<1x256xf32>
    %48 = math.tanh %47 : vector<1x256xf32>
    %49 = arith.truncf %48 : vector<1x256xf32> to vector<1x256xbf16>
    %cst_30 = arith.constant dense<0.000000e+00> : vector<1x256xf32>
    %50 = tpu.matmul %49, %9, %cst_30 {dimension_numbers = #tpu.dot_dimension_numbers<[1], [0], [0], [1], [0, 0, 1, 1], [], []>} : vector<1x256xbf16>, vector<256x256xbf16>, vector<1x256xf32> -> vector<1x256xf32>
    %cst_31 = arith.constant dense<0.000000e+00> : vector<1x256xf32>
    %51 = tpu.matmul %43, %10, %cst_31 {dimension_numbers = #tpu.dot_dimension_numbers<[1], [0], [0], [1], [0, 0, 1, 1], [], []>} : vector<1x256xbf16>, vector<256x256xbf16>, vector<1x256xf32> -> vector<1x256xf32>
    %52 = arith.addf %50, %51 : vector<1x256xf32>
    %53 = arith.addf %52, %11 : vector<1x256xf32>
    %54 = math.tanh %53 : vector<1x256xf32>
    %55 = arith.index_cast %c2_i32 : i32 to index
    %c0_32 = arith.constant 0 : index
    %56 = vector.load %arg14[%55, %c0_32] : memref<8x256xf32, #tpu.memory_space<vmem>>, vector<1x256xf32>
    tpu.vector_store %arg14[%55, %c0_32], %54 {strides = array<i32>} : memref<8x256xf32, #tpu.memory_space<vmem>>, vector<1x256xf32>,
    %57 = arith.truncf %54 : vector<1x256xf32> to vector<1x256xbf16>
    %c3_i32 = arith.constant 3 : i32
    %58 = arith.index_cast %c3_i32 : i32 to index
    %c0_33 = arith.constant 0 : index
    %59 = vector.load %arg13[%58, %c0_33] : memref<8x256xf32, #tpu.memory_space<vmem>>, vector<1x256xf32>
    %cst_34 = arith.constant dense<0.000000e+00> : vector<1x256xf32>
    %60 = tpu.matmul %49, %8, %cst_34 {dimension_numbers = #tpu.dot_dimension_numbers<[1], [0], [0], [1], [0, 0, 1, 1], [], []>} : vector<1x256xbf16>, vector<256x256xbf16>, vector<1x256xf32> -> vector<1x256xf32>
    %61 = arith.addf %59, %60 : vector<1x256xf32>
    %62 = math.tanh %61 : vector<1x256xf32>
    %63 = arith.truncf %62 : vector<1x256xf32> to vector<1x256xbf16>
    %cst_35 = arith.constant dense<0.000000e+00> : vector<1x256xf32>
    %64 = tpu.matmul %63, %9, %cst_35 {dimension_numbers = #tpu.dot_dimension_numbers<[1], [0], [0], [1], [0, 0, 1, 1], [], []>} : vector<1x256xbf16>, vector<256x256xbf16>, vector<1x256xf32> -> vector<1x256xf32>
    %cst_36 = arith.constant dense<0.000000e+00> : vector<1x256xf32>
    %65 = tpu.matmul %57, %10, %cst_36 {dimension_numbers = #tpu.dot_dimension_numbers<[1], [0], [0], [1], [0, 0, 1, 1], [], []>} : vector<1x256xbf16>, vector<256x256xbf16>, vector<1x256xf32> -> vector<1x256xf32>
    %66 = arith.addf %64, %65 : vector<1x256xf32>
    %67 = arith.addf %66, %11 : vector<1x256xf32>
    %68 = math.tanh %67 : vector<1x256xf32>
    %69 = arith.index_cast %c3_i32 : i32 to index
    %c0_37 = arith.constant 0 : index
    %70 = vector.load %arg14[%69, %c0_37] : memref<8x256xf32, #tpu.memory_space<vmem>>, vector<1x256xf32>
    tpu.vector_store %arg14[%69, %c0_37], %68 {strides = array<i32>} : memref<8x256xf32, #tpu.memory_space<vmem>>, vector<1x256xf32>,
    %71 = arith.truncf %68 : vector<1x256xf32> to vector<1x256xbf16>
    %c4_i32 = arith.constant 4 : i32
    %72 = arith.index_cast %c4_i32 : i32 to index
    %c0_38 = arith.constant 0 : index
    %73 = vector.load %arg13[%72, %c0_38] : memref<8x256xf32, #tpu.memory_space<vmem>>, vector<1x256xf32>
    %cst_39 = arith.constant dense<0.000000e+00> : vector<1x256xf32>
    %74 = tpu.matmul %63, %8, %cst_39 {dimension_numbers = #tpu.dot_dimension_numbers<[1], [0], [0], [1], [0, 0, 1, 1], [], []>} : vector<1x256xbf16>, vector<256x256xbf16>, vector<1x256xf32> -> vector<1x256xf32>
    %75 = arith.addf %73, %74 : vector<1x256xf32>
    %76 = math.tanh %75 : vector<1x256xf32>
    %77 = arith.truncf %76 : vector<1x256xf32> to vector<1x256xbf16>
    %cst_40 = arith.constant dense<0.000000e+00> : vector<1x256xf32>
    %78 = tpu.matmul %77, %9, %cst_40 {dimension_numbers = #tpu.dot_dimension_numbers<[1], [0], [0], [1], [0, 0, 1, 1], [], []>} : vector<1x256xbf16>, vector<256x256xbf16>, vector<1x256xf32> -> vector<1x256xf32>
    %cst_41 = arith.constant dense<0.000000e+00> : vector<1x256xf32>
    %79 = tpu.matmul %71, %10, %cst_41 {dimension_numbers = #tpu.dot_dimension_numbers<[1], [0], [0], [1], [0, 0, 1, 1], [], []>} : vector<1x256xbf16>, vector<256x256xbf16>, vector<1x256xf32> -> vector<1x256xf32>
    %80 = arith.addf %78, %79 : vector<1x256xf32>
    %81 = arith.addf %80, %11 : vector<1x256xf32>
    %82 = math.tanh %81 : vector<1x256xf32>
    %83 = arith.index_cast %c4_i32 : i32 to index
    %c0_42 = arith.constant 0 : index
    %84 = vector.load %arg14[%83, %c0_42] : memref<8x256xf32, #tpu.memory_space<vmem>>, vector<1x256xf32>
    tpu.vector_store %arg14[%83, %c0_42], %82 {strides = array<i32>} : memref<8x256xf32, #tpu.memory_space<vmem>>, vector<1x256xf32>,
    %85 = arith.truncf %82 : vector<1x256xf32> to vector<1x256xbf16>
    %c5_i32 = arith.constant 5 : i32
    %86 = arith.index_cast %c5_i32 : i32 to index
    %c0_43 = arith.constant 0 : index
    %87 = vector.load %arg13[%86, %c0_43] : memref<8x256xf32, #tpu.memory_space<vmem>>, vector<1x256xf32>
    %cst_44 = arith.constant dense<0.000000e+00> : vector<1x256xf32>
    %88 = tpu.matmul %77, %8, %cst_44 {dimension_numbers = #tpu.dot_dimension_numbers<[1], [0], [0], [1], [0, 0, 1, 1], [], []>} : vector<1x256xbf16>, vector<256x256xbf16>, vector<1x256xf32> -> vector<1x256xf32>
    %89 = arith.addf %87, %88 : vector<1x256xf32>
    %90 = math.tanh %89 : vector<1x256xf32>
    %91 = arith.truncf %90 : vector<1x256xf32> to vector<1x256xbf16>
    %cst_45 = arith.constant dense<0.000000e+00> : vector<1x256xf32>
    %92 = tpu.matmul %91, %9, %cst_45 {dimension_numbers = #tpu.dot_dimension_numbers<[1], [0], [0], [1], [0, 0, 1, 1], [], []>} : vector<1x256xbf16>, vector<256x256xbf16>, vector<1x256xf32> -> vector<1x256xf32>
    %cst_46 = arith.constant dense<0.000000e+00> : vector<1x256xf32>
    %93 = tpu.matmul %85, %10, %cst_46 {dimension_numbers = #tpu.dot_dimension_numbers<[1], [0], [0], [1], [0, 0, 1, 1], [], []>} : vector<1x256xbf16>, vector<256x256xbf16>, vector<1x256xf32> -> vector<1x256xf32>
    %94 = arith.addf %92, %93 : vector<1x256xf32>
    %95 = arith.addf %94, %11 : vector<1x256xf32>
    %96 = math.tanh %95 : vector<1x256xf32>
    %97 = arith.index_cast %c5_i32 : i32 to index
    %c0_47 = arith.constant 0 : index
    %98 = vector.load %arg14[%97, %c0_47] : memref<8x256xf32, #tpu.memory_space<vmem>>, vector<1x256xf32>
    tpu.vector_store %arg14[%97, %c0_47], %96 {strides = array<i32>} : memref<8x256xf32, #tpu.memory_space<vmem>>, vector<1x256xf32>,
    %99 = arith.truncf %96 : vector<1x256xf32> to vector<1x256xbf16>
    %c6_i32 = arith.constant 6 : i32
    %100 = arith.index_cast %c6_i32 : i32 to index
    %c0_48 = arith.constant 0 : index
    %101 = vector.load %arg13[%100, %c0_48] : memref<8x256xf32, #tpu.memory_space<vmem>>, vector<1x256xf32>
    %cst_49 = arith.constant dense<0.000000e+00> : vector<1x256xf32>
    %102 = tpu.matmul %91, %8, %cst_49 {dimension_numbers = #tpu.dot_dimension_numbers<[1], [0], [0], [1], [0, 0, 1, 1], [], []>} : vector<1x256xbf16>, vector<256x256xbf16>, vector<1x256xf32> -> vector<1x256xf32>
    %103 = arith.addf %101, %102 : vector<1x256xf32>
    %104 = math.tanh %103 : vector<1x256xf32>
    %105 = arith.truncf %104 : vector<1x256xf32> to vector<1x256xbf16>
    %cst_50 = arith.constant dense<0.000000e+00> : vector<1x256xf32>
    %106 = tpu.matmul %105, %9, %cst_50 {dimension_numbers = #tpu.dot_dimension_numbers<[1], [0], [0], [1], [0, 0, 1, 1], [], []>} : vector<1x256xbf16>, vector<256x256xbf16>, vector<1x256xf32> -> vector<1x256xf32>
    %cst_51 = arith.constant dense<0.000000e+00> : vector<1x256xf32>
    %107 = tpu.matmul %99, %10, %cst_51 {dimension_numbers = #tpu.dot_dimension_numbers<[1], [0], [0], [1], [0, 0, 1, 1], [], []>} : vector<1x256xbf16>, vector<256x256xbf16>, vector<1x256xf32> -> vector<1x256xf32>
    %108 = arith.addf %106, %107 : vector<1x256xf32>
    %109 = arith.addf %108, %11 : vector<1x256xf32>
    %110 = math.tanh %109 : vector<1x256xf32>
    %111 = arith.index_cast %c6_i32 : i32 to index
    %c0_52 = arith.constant 0 : index
    %112 = vector.load %arg14[%111, %c0_52] : memref<8x256xf32, #tpu.memory_space<vmem>>, vector<1x256xf32>
    tpu.vector_store %arg14[%111, %c0_52], %110 {strides = array<i32>} : memref<8x256xf32, #tpu.memory_space<vmem>>, vector<1x256xf32>,
    %113 = arith.truncf %110 : vector<1x256xf32> to vector<1x256xbf16>
    %c7_i32 = arith.constant 7 : i32
    %114 = arith.index_cast %c7_i32 : i32 to index
    %c0_53 = arith.constant 0 : index
    %115 = vector.load %arg13[%114, %c0_53] : memref<8x256xf32, #tpu.memory_space<vmem>>, vector<1x256xf32>
    %cst_54 = arith.constant dense<0.000000e+00> : vector<1x256xf32>
    %116 = tpu.matmul %105, %8, %cst_54 {dimension_numbers = #tpu.dot_dimension_numbers<[1], [0], [0], [1], [0, 0, 1, 1], [], []>} : vector<1x256xbf16>, vector<256x256xbf16>, vector<1x256xf32> -> vector<1x256xf32>
    %117 = arith.addf %115, %116 : vector<1x256xf32>
    %118 = math.tanh %117 : vector<1x256xf32>
    %119 = arith.truncf %118 : vector<1x256xf32> to vector<1x256xbf16>
    %cst_55 = arith.constant dense<0.000000e+00> : vector<1x256xf32>
    %120 = tpu.matmul %119, %9, %cst_55 {dimension_numbers = #tpu.dot_dimension_numbers<[1], [0], [0], [1], [0, 0, 1, 1], [], []>} : vector<1x256xbf16>, vector<256x256xbf16>, vector<1x256xf32> -> vector<1x256xf32>
    %cst_56 = arith.constant dense<0.000000e+00> : vector<1x256xf32>
    %121 = tpu.matmul %113, %10, %cst_56 {dimension_numbers = #tpu.dot_dimension_numbers<[1], [0], [0], [1], [0, 0, 1, 1], [], []>} : vector<1x256xbf16>, vector<256x256xbf16>, vector<1x256xf32> -> vector<1x256xf32>
    %122 = arith.addf %120, %121 : vector<1x256xf32>
    %123 = arith.addf %122, %11 : vector<1x256xf32>
    %124 = math.tanh %123 : vector<1x256xf32>
    %125 = arith.index_cast %c7_i32 : i32 to index
    %c0_57 = arith.constant 0 : index
    %126 = vector.load %arg14[%125, %c0_57] : memref<8x256xf32, #tpu.memory_space<vmem>>, vector<1x256xf32>
    tpu.vector_store %arg14[%125, %c0_57], %124 {strides = array<i32>} : memref<8x256xf32, #tpu.memory_space<vmem>>, vector<1x256xf32>,
    %127 = arith.truncf %124 : vector<1x256xf32> to vector<1x256xbf16>
    %c8_i32 = arith.constant 8 : i32
    %c0_58 = arith.constant 0 : index
    %c0_59 = arith.constant 0 : index
    %128 = vector.load %arg14[%c0_58, %c0_59] : memref<8x256xf32, #tpu.memory_space<vmem>>, vector<8x256xf32>
    %129 = arith.truncf %128 : vector<8x256xf32> to vector<8x256xbf16>
    %c0_60 = arith.constant 0 : index
    %c0_61 = arith.constant 0 : index
    %130 = vector.load %arg9[%c0_60, %c0_61] : memref<256x128xbf16, #tpu.memory_space<vmem>>, vector<256x128xbf16>
    %cst_62 = arith.constant dense<0.000000e+00> : vector<8x128xf32>
    %131 = tpu.matmul %129, %130, %cst_62 {dimension_numbers = #tpu.dot_dimension_numbers<[1], [0], [0], [1], [0, 0, 1, 1], [], []>} : vector<8x256xbf16>, vector<256x128xbf16>, vector<8x128xf32> -> vector<8x128xf32>
    %c0_63 = arith.constant 0 : index
    %c0_64 = arith.constant 0 : index
    %132 = vector.load %arg10[%c0_63, %c0_64] : memref<1x128xf32, #tpu.memory_space<vmem>>, vector<1x128xf32>
    %133 = vector.broadcast %132 : vector<1x128xf32> to vector<8x128xf32>
    %134 = arith.addf %131, %133 : vector<8x128xf32>
    %c0_65 = arith.constant 0 : index
    %c0_66 = arith.constant 0 : index
    %135 = vector.load %arg11[%c0_65, %c0_66] : memref<8x128xf32, #tpu.memory_space<vmem>>, vector<8x128xf32>
    tpu.vector_store %arg11[%c0_65, %c0_66], %134 {strides = array<i32>} : memref<8x128xf32, #tpu.memory_space<vmem>>, vector<8x128xf32>,
    %136 = arith.extf %119 : vector<1x256xbf16> to vector<1x256xf32>
    %c0_67 = arith.constant 0 : index
    %c0_68 = arith.constant 0 : index
    %137 = vector.load %arg12[%c0_67, %c0_68] : memref<2x256xf32, #tpu.memory_space<vmem>>, vector<1x256xf32>
    tpu.vector_store %arg12[%c0_67, %c0_68], %136 {strides = array<i32>} : memref<2x256xf32, #tpu.memory_space<vmem>>, vector<1x256xf32>,
    %138 = arith.extf %127 : vector<1x256xbf16> to vector<1x256xf32>
    %c1_69 = arith.constant 1 : index
    %c0_70 = arith.constant 0 : index
    %139 = vector.load %arg12[%c1_69, %c0_70] : memref<2x256xf32, #tpu.memory_space<vmem>>, vector<1x256xf32>
    tpu.vector_store %arg12[%c1_69, %c0_70], %138 {strides = array<i32>} : memref<2x256xf32, #tpu.memory_space<vmem>>, vector<1x256xf32>,
    return
  }
  func.func @transform_0(%arg0: i32) -> (i32, i32) {
    %c0_i32 = arith.constant 0 : i32
    %c0_i32_0 = arith.constant 0 : i32
    %c0_i32_1 = arith.constant 0 : i32
    return %c0_i32, %c0_i32_0 : i32, i32
  }
  func.func @transform_1(%arg0: i32) -> (i32, i32) {
    %c0_i32 = arith.constant 0 : i32
    %c0_i32_0 = arith.constant 0 : i32
    %c0_i32_1 = arith.constant 0 : i32
    return %c0_i32, %c0_i32_0 : i32, i32
  }
  func.func @transform_2(%arg0: i32) -> (i32, i32) {
    %c0_i32 = arith.constant 0 : i32
    %c0_i32_0 = arith.constant 0 : i32
    %c0_i32_1 = arith.constant 0 : i32
    return %c0_i32, %c0_i32_0 : i32, i32
  }
  func.func @transform_3(%arg0: i32) -> (i32, i32) {
    %c0_i32 = arith.constant 0 : i32
    %c0_i32_0 = arith.constant 0 : i32
    %c0_i32_1 = arith.constant 0 : i32
    return %c0_i32, %c0_i32_0 : i32, i32
  }
  func.func @transform_4(%arg0: i32) -> (i32, i32) {
    %c0_i32 = arith.constant 0 : i32
    %c0_i32_0 = arith.constant 0 : i32
    %c0_i32_1 = arith.constant 0 : i32
    return %c0_i32, %c0_i32_0 : i32, i32
  }
  func.func @transform_5(%arg0: i32) -> (i32, i32) {
    %c0_i32 = arith.constant 0 : i32
    %c0_i32_0 = arith.constant 0 : i32
    %c0_i32_1 = arith.constant 0 : i32
    return %c0_i32, %c0_i32_0 : i32, i32
  }
  func.func @transform_6(%arg0: i32) -> (i32, i32) {
    %c0_i32 = arith.constant 0 : i32
    %c0_i32_0 = arith.constant 0 : i32
    %c0_i32_1 = arith.constant 0 : i32
    return %c0_i32, %c0_i32_0 : i32, i32
  }
  func.func @transform_7(%arg0: i32) -> (i32, i32) {
    %c0_i32 = arith.constant 0 : i32
    %c0_i32_0 = arith.constant 0 : i32
    %c0_i32_1 = arith.constant 0 : i32
    return %c0_i32, %c0_i32_0 : i32, i32
  }
  func.func @transform_8(%arg0: i32) -> (i32, i32) {
    %c0_i32 = arith.constant 0 : i32
    %c0_i32_0 = arith.constant 0 : i32
    %c0_i32_1 = arith.constant 0 : i32
    return %c0_i32, %c0_i32_0 : i32, i32
  }
  func.func @transform_9(%arg0: i32) -> (i32, i32) {
    %c0_i32 = arith.constant 0 : i32
    %c0_i32_0 = arith.constant 0 : i32
    %c0_i32_1 = arith.constant 0 : i32
    return %c0_i32, %c0_i32_0 : i32, i32
  }
  func.func @transform_10(%arg0: i32) -> (i32, i32) {
    %c0_i32 = arith.constant 0 : i32
    %c0_i32_0 = arith.constant 0 : i32
    %c0_i32_1 = arith.constant 0 : i32
    return %c0_i32, %c0_i32_0 : i32, i32
  }
  func.func @transform_11(%arg0: i32) -> (i32, i32) {
    %c0_i32 = arith.constant 0 : i32
    %c0_i32_0 = arith.constant 0 : i32
    %c0_i32_1 = arith.constant 0 : i32
    return %c0_i32, %c0_i32_0 : i32, i32
  }
}

</mosaic_0001>

<llo_original>
// kernel: rnn_state_forward.1
$region0: #{rnn_state_forward.1}
  #allocation0 [shape = 'u32[]', space=smem, size = 0x4, offset = 0x4, fixed_abs, tag = 'smem constant byte address 0x4 - core index']
  #allocation1 [shape = 'u32[144,128]{1,0:T(1,128)}', space=vmem, size = 0x12000, scoped, tag = 'internal scratch']
  #allocation2 [shape = 'f32[8,256]{1,0:T(8,128)}', space=vmem, size = 0x2000, scoped, tag = 'scratch operand']
  #allocation3 [shape = 'f32[8,256]{1,0:T(8,128)}', space=vmem, size = 0x2000, scoped, tag = 'scratch operand']
  %s0 = inlined_call_operand.vmem [shape: f32[8,128], index: 0, kind: input, shape index: {}]
  %s1 = inlined_call_operand.vmem [shape: f32[2,256], index: 1, kind: input, shape index: {}]
  %s2 = inlined_call_operand.vmem [shape: bf16[128,256], index: 2, kind: input, shape index: {}]
  %s3 = inlined_call_operand.hbm [shape: bf16[256,256], index: 3, kind: input, shape index: {}]
  %s4 = inlined_call_operand.vmem [shape: f32[1,256], index: 4, kind: input, shape index: {}]
  %s5 = inlined_call_operand.hbm [shape: bf16[256,256], index: 5, kind: input, shape index: {}]
  %s6 = inlined_call_operand.hbm [shape: bf16[256,256], index: 6, kind: input, shape index: {}]
  %s7 = inlined_call_operand.vmem [shape: f32[1,256], index: 7, kind: input, shape index: {}]
  %s8 = inlined_call_operand.hbm [shape: bf16[256,128], index: 8, kind: input, shape index: {}]
  %s9 = inlined_call_operand.hbm [shape: f32[1,128], index: 9, kind: input, shape index: {}]
  %s10 = inlined_call_operand.hbm [shape: f32[8,128], index: 10, kind: output, shape index: {0}]
  %s11 = inlined_call_operand.hbm [shape: f32[2,256], index: 11, kind: output, shape index: {1}]
  %12 = xla_tuple %s10, %s11
  %s13 = sld [smem:[#allocation0]]
  $region78: #{rnn_state_forward.1} parent=0
    _
  %s15 = ssub.s32 1, %s13
  %s16 = scalar_select 0, %s15, %s13
  $region1: #{rnn_state_forward.1} parent=0
    #allocation4 [shape = 'u8[131072]{0}', space=vmem, size = 0x20000, scoped, tag = 'input window, operand 3, single buffered']
    #allocation5 [shape = 's32[1]{0}', space=sflag, size = 0x4, scoped, tag = 'scoped memory for rnn_state_forward.1']
    #allocation6 [shape = 's32[1]{0}', space=sflag, size = 0x4, scoped, tag = 'scoped memory for rnn_state_forward.1']
    #allocation7 [shape = 'u8[131072]{0}', space=vmem, size = 0x20000, scoped, tag = 'input window, operand 5, single buffered']
    #allocation8 [shape = 's32[1]{0}', space=sflag, size = 0x4, scoped, tag = 'scoped memory for rnn_state_forward.1']
    #allocation9 [shape = 'u8[131072]{0}', space=vmem, size = 0x20000, scoped, tag = 'input window, operand 6, single buffered']
    #allocation10 [shape = 'u8[65536]{0}', space=vmem, size = 0x10000, scoped, tag = 'input window, operand 8, single buffered']
    #allocation11 [shape = 's32[1]{0}', space=sflag, size = 0x4, scoped, tag = 'scoped memory for rnn_state_forward.1']
    #allocation12 [shape = 'u8[512]{0}', space=vmem, size = 0x400, scoped, tag = 'input window, operand 9, single buffered']
    #allocation13 [shape = 'u8[4096]{0}', space=vmem, size = 0x1000, scoped, tag = 'output window, operand 0, single buffered']
    #allocation14 [shape = 'u8[2048]{0}', space=vmem, size = 0x800, scoped, tag = 'output window, operand 1, single buffered']
    #allocation15 [shape = 's32[1]{0}', space=sflag, size = 0x4, scoped, tag = 'scoped memory for rnn_state_forward.1']
    %17 = vsyncpa [#allocation5], 0
    %18 = vsyncpa [#allocation8], 0
    %19 = vsyncpa [#allocation11], 0
    %20 = vsyncpa [#allocation6], 0
    %21 = vsyncpa [#allocation15], 0
    // Predicated region
    $region2: #{rnn_state_forward.1} parent=1 // pred_check
      _
    $region3: #{rnn_state_forward.1} parent=1 // pred_check_branch
      %23 = sbr.rel (0) target = $region5
    $region4: #{rnn_state_forward.1} parent=1 // pred_region
      _
    $region5: #{rnn_state_forward.1} parent=1 // pred_fallthru
      _
    // Predicated region
    $region6: #{rnn_state_forward.1} parent=1 // pred_check
      _
    $region7: #{rnn_state_forward.1} parent=1 // pred_check_branch
      %25 = sbr.rel (0) target = $region9
    $region8: #{rnn_state_forward.1} parent=1 // pred_region
      _
    $region9: #{rnn_state_forward.1} parent=1 // pred_fallthru
      _
    // Predicated region
    $region10: #{rnn_state_forward.1} parent=1 // pred_check
      _
    $region11: #{rnn_state_forward.1} parent=1 // pred_check_branch
      %27 = sbr.rel (0) target = $region13
    $region12: #{rnn_state_forward.1} parent=1 // pred_region
      _
    $region13: #{rnn_state_forward.1} parent=1 // pred_fallthru
      _
    // Predicated region
    $region14: #{rnn_state_forward.1} parent=1 // pred_check
      _
    $region15: #{rnn_state_forward.1} parent=1 // pred_check_branch
      %29 = sbr.rel (0) target = $region17
    $region16: #{rnn_state_forward.1} parent=1 // pred_region
      %s31 = ssub.s32 4096, 4096
      %32 = vsyncadd [#allocation5], %s31
      %s33 = sshll.u32 [#allocation4], 4
      %s34 = int_to_ptr.vmem [resolvable:$true] %s33
      %39 = dma.hbm_to_vmem [thread:$0]  %s3, 4096, %s34, [#allocation5], 128, 128, 8
    $region17: #{rnn_state_forward.1} parent=1 // pred_fallthru
      _
    // Predicated region
    $region18: #{rnn_state_forward.1} parent=1 // pred_check
      _
    $region19: #{rnn_state_forward.1} parent=1 // pred_check_branch
      %41 = sbr.rel (0) target = $region21
    $region20: #{rnn_state_forward.1} parent=1 // pred_region
      _
    $region21: #{rnn_state_forward.1} parent=1 // pred_fallthru
      _
    // Predicated region
    $region22: #{rnn_state_forward.1} parent=1 // pred_check
      _
    $region23: #{rnn_state_forward.1} parent=1 // pred_check_branch
      %43 = sbr.rel (0) target = $region25
    $region24: #{rnn_state_forward.1} parent=1 // pred_region
      %s45 = ssub.s32 4096, 4096
      %46 = vsyncadd [#allocation8], %s45
      %s47 = sshll.u32 [#allocation7], 4
      %s48 = int_to_ptr.vmem [resolvable:$true] %s47
      %53 = dma.hbm_to_vmem [thread:$0]  %s5, 4096, %s48, [#allocation8], 128, 128, 8
    $region25: #{rnn_state_forward.1} parent=1 // pred_fallthru
      _
    // Predicated region
    $region26: #{rnn_state_forward.1} parent=1 // pred_check
      _
    $region27: #{rnn_state_forward.1} parent=1 // pred_check_branch
      %55 = sbr.rel (0) target = $region29
    $region28: #{rnn_state_forward.1} parent=1 // pred_region
      %s57 = ssub.s32 4096, 4096
      %58 = vsyncadd [#allocation8], %s57
      %s59 = sshll.u32 [#allocation9], 4
      %s60 = int_to_ptr.vmem [resolvable:$true] %s59
      %65 = dma.hbm_to_vmem [thread:$0]  %s6, 4096, %s60, [#allocation8], 128, 128, 8
    $region29: #{rnn_state_forward.1} parent=1 // pred_fallthru
      _
    // Predicated region
    $region30: #{rnn_state_forward.1} parent=1 // pred_check
      _
    $region31: #{rnn_state_forward.1} parent=1 // pred_check_branch
      %67 = sbr.rel (0) target = $region33
    $region32: #{rnn_state_forward.1} parent=1 // pred_region
      _
    $region33: #{rnn_state_forward.1} parent=1 // pred_fallthru
      _
    // Predicated region
    $region34: #{rnn_state_forward.1} parent=1 // pred_check
      _
    $region35: #{rnn_state_forward.1} parent=1 // pred_check_branch
      %69 = sbr.rel (0) target = $region37
    $region36: #{rnn_state_forward.1} parent=1 // pred_region
      %s71 = ssub.s32 2048, 2048
      %72 = vsyncadd [#allocation11], %s71
      %s73 = sshll.u32 [#allocation10], 4
      %s74 = int_to_ptr.vmem [resolvable:$true] %s73
      %79 = dma.hbm_to_vmem [thread:$0]  %s8, 2048, %s74, [#allocation11], 64, 64, 4
    $region37: #{rnn_state_forward.1} parent=1 // pred_fallthru
      _
    // Predicated region
    $region38: #{rnn_state_forward.1} parent=1 // pred_check
      _
    $region39: #{rnn_state_forward.1} parent=1 // pred_check_branch
      %81 = sbr.rel (0) target = $region41
    $region40: #{rnn_state_forward.1} parent=1 // pred_region
      %s83 = ssub.s32 16, 16
      %84 = vsyncadd [#allocation11], %s83
      %s86 = sshll.u32 [#allocation12], 4
      %s87 = int_to_ptr.vmem [resolvable:$true] %s86
      %89 = dma.hbm_to_vmem [thread:$0]  %s9, 16, %s87, [#allocation11]
    $region41: #{rnn_state_forward.1} parent=1 // pred_fallthru
      _
    // Predicated region
    $region42: #{rnn_state_forward.1} parent=1 // pred_check
      _
    $region43: #{rnn_state_forward.1} parent=1 // pred_check_branch
      %91 = sbr.rel (0) target = $region45
    $region44: #{rnn_state_forward.1} parent=1 // pred_region
      %92 = dma.done [#allocation5], 4096
    $region45: #{rnn_state_forward.1} parent=1 // pred_fallthru
      _
    // Predicated region
    $region46: #{rnn_state_forward.1} parent=1 // pred_check
      _
    $region47: #{rnn_state_forward.1} parent=1 // pred_check_branch
      %94 = sbr.rel (0) target = $region49
    $region48: #{rnn_state_forward.1} parent=1 // pred_region
      %95 = dma.done [#allocation8], 4096
    $region49: #{rnn_state_forward.1} parent=1 // pred_fallthru
      _
    // Predicated region
    $region50: #{rnn_state_forward.1} parent=1 // pred_check
      _
    $region51: #{rnn_state_forward.1} parent=1 // pred_check_branch
      %97 = sbr.rel (0) target = $region53
    $region52: #{rnn_state_forward.1} parent=1 // pred_region
      %98 = dma.done [#allocation8], 4096
    $region53: #{rnn_state_forward.1} parent=1 // pred_fallthru
      _
    // Predicated region
    $region54: #{rnn_state_forward.1} parent=1 // pred_check
      _
    $region55: #{rnn_state_forward.1} parent=1 // pred_check_branch
      %100 = sbr.rel (0) target = $region57
    $region56: #{rnn_state_forward.1} parent=1 // pred_region
      %101 = dma.done [#allocation11], 2048
    $region57: #{rnn_state_forward.1} parent=1 // pred_fallthru
      _
    // Predicated region
    $region58: #{rnn_state_forward.1} parent=1 // pred_check
      _
    $region59: #{rnn_state_forward.1} parent=1 // pred_check_branch
      %103 = sbr.rel (0) target = $region61
    $region60: #{rnn_state_forward.1} parent=1 // pred_region
      %104 = dma.done [#allocation11], 16
    $region61: #{rnn_state_forward.1} parent=1 // pred_fallthru
      _
    %v106 = vld [vmem:[%s0] sm:$0xff]
    %v107 = vpack.c.bf16 %v106, %v106
    %v108 = vld [vmem:[%s2] sm:$0xff]
    %v109 = vld [vmem:[%s2 + $0x8] sm:$0xff]
    %v110 = vld [vmem:[%s2 + $0x10] sm:$0xff]
    %v111 = vld [vmem:[%s2 + $0x18] sm:$0xff]
    %v112 = vld [vmem:[%s2 + $0x20] sm:$0xff]
    %v113 = vld [vmem:[%s2 + $0x28] sm:$0xff]
    %v114 = vld [vmem:[%s2 + $0x30] sm:$0xff]
    %v115 = vld [vmem:[%s2 + $0x38] sm:$0xff]
    %v116 = vld [vmem:[%s2 + $0x40] sm:$0xff]
    %v117 = vld [vmem:[%s2 + $0x48] sm:$0xff]
    %v118 = vld [vmem:[%s2 + $0x50] sm:$0xff]
    %v119 = vld [vmem:[%s2 + $0x58] sm:$0xff]
    %v120 = vld [vmem:[%s2 + $0x60] sm:$0xff]
    %v121 = vld [vmem:[%s2 + $0x68] sm:$0xff]
    %v122 = vld [vmem:[%s2 + $0x70] sm:$0xff]
    %v123 = vld [vmem:[%s2 + $0x78] sm:$0xff]
    %v124 = vld [vmem:[%s4] sm:$0x3]
    %v126 = vlaneseq
    %v127 = vshrl.u32 %v126, 7
    %v128 = vsub.s32 0, %v127
    %v129 = vrot.slane %v124, %v128
    %v130 = vlaneseq
    %v131 = vshrl.u32 %v130, 7
    %v132 = vsub.s32 1, %v131
    %v133 = vrot.slane %v124, %v132
    %v152 = vunpack.c.l.b16 %v108
    %v153 = vunpack.c.h.b16 %v108
    %v154 = vunpack.c.l.b16 %v109
    %v155 = vunpack.c.h.b16 %v109
    %v156 = vunpack.c.l.b16 %v110
    %v157 = vunpack.c.h.b16 %v110
    %v158 = vunpack.c.l.b16 %v111
    %v159 = vunpack.c.h.b16 %v111
    %v160 = vunpack.c.l.b16 %v112
    %v161 = vunpack.c.h.b16 %v112
    %v162 = vunpack.c.l.b16 %v113
    %v163 = vunpack.c.h.b16 %v113
    %v164 = vunpack.c.l.b16 %v114
    %v165 = vunpack.c.h.b16 %v114
    %v166 = vunpack.c.l.b16 %v115
    %v167 = vunpack.c.h.b16 %v115
    %v168 = vunpack.c.l.b16 %v116
    %v169 = vunpack.c.h.b16 %v116
    %v170 = vunpack.c.l.b16 %v117
    %v171 = vunpack.c.h.b16 %v117
    %v172 = vunpack.c.l.b16 %v118
    %v173 = vunpack.c.h.b16 %v118
    %v174 = vunpack.c.l.b16 %v119
    %v175 = vunpack.c.h.b16 %v119
    %v176 = vunpack.c.l.b16 %v120
    %v177 = vunpack.c.h.b16 %v120
    %v178 = vunpack.c.l.b16 %v121
    %v179 = vunpack.c.h.b16 %v121
    %v180 = vunpack.c.l.b16 %v122
    %v181 = vunpack.c.h.b16 %v122
    %v182 = vunpack.c.l.b16 %v123
    %v183 = vunpack.c.h.b16 %v123
    %v184 = vpack.c.b16 %v154, %v152
    %v185 = vpack.c.b16 %v155, %v153
    %v186 = vpack.c.b16 %v158, %v156
    %v187 = vpack.c.b16 %v159, %v157
    %v188 = vpack.c.b16 %v162, %v160
    %v189 = vpack.c.b16 %v163, %v161
    %v190 = vpack.c.b16 %v166, %v164
    %v191 = vpack.c.b16 %v167, %v165
    %v192 = vpack.c.b16 %v170, %v168
    %v193 = vpack.c.b16 %v171, %v169
    %v194 = vpack.c.b16 %v174, %v172
    %v195 = vpack.c.b16 %v175, %v173
    %v196 = vpack.c.b16 %v178, %v176
    %v197 = vpack.c.b16 %v179, %v177
    %v198 = vpack.c.b16 %v182, %v180
    %v199 = vpack.c.b16 %v183, %v181
    %216 = vmatprep.subr.bf16.mxu0 %v199
    %217 = vmatpush1.bf16.msra.mxu0 %v198
    %218 = vmatprep.subr.bf16.mxu0 %v197
    %219 = vmatpush1.bf16.msra.mxu0 %v196
    %220 = vmatprep.subr.bf16.mxu0 %v195
    %221 = vmatpush1.bf16.msra.mxu0 %v194
    %222 = vmatprep.subr.bf16.mxu0 %v193
    %223 = vmatpush1.bf16.msra.mxu0 %v192
    %224 = vmatprep.subr.bf16.mxu0 %v191
    %225 = vmatpush1.bf16.msra.mxu0 %v190
    %226 = vmatprep.subr.bf16.mxu0 %v189
    %227 = vmatpush1.bf16.msra.mxu0 %v188
    %228 = vmatprep.subr.bf16.mxu0 %v187
    %229 = vmatpush1.bf16.msra.mxu0 %v186
    %230 = vmatprep.subr.bf16.mxu0 %v185
    %231 = vmatpush1.bf16.msra.mxu0 %v184
    %232 = vmatprep.subr.bf16.mxu0 0
    %233 = vmatpush2.bf16.msra.mxu0 0
    %234 = vmatprep.subr.bf16.mxu0 0
    %235 = vmatpush2.bf16.msra.mxu0 0
    %236 = vmatprep.subr.bf16.mxu0 0
    %237 = vmatpush2.bf16.msra.mxu0 0
    %238 = vmatprep.subr.bf16.mxu0 0
    %239 = vmatpush2.bf16.msra.mxu0 0
    %240 = vmatprep.subr.bf16.mxu0 0
    %241 = vmatpush2.bf16.msra.mxu0 0
    %242 = vmatprep.subr.bf16.mxu0 0
    %243 = vmatpush2.bf16.msra.mxu0 0
    %244 = vmatprep.subr.bf16.mxu0 0
    %245 = vmatpush2.bf16.msra.mxu0 0
    %246 = vmatprep.subr.bf16.mxu0 0
    %247 = vmatpush2.bf16.msra.mxu0 0
    %248 = vmatprep.mubr.bf16.mxu0 0
    %249 = vmatmul.mubr.bf16.gmra.mxu0 %v107
    %v250 = vpop.f32.mrf.mxu0
    %v251 = vadd.f32 %v129, %v250
    %v252 = vpop.f32.mrf.mxu0
    %v253 = vadd.f32 %v133, %v252
    %v254 = vpop.f32.mrf.mxu0
    %v255 = vpop.f32.mrf.mxu0
    %256 = vdwg.mxu0
    %257 = vst [vmem:[#allocation2] sm:$0xff] %v251
    %258 = vst [vmem:[#allocation2 + $0x8] sm:$0xff] %v253
    %v259 = vld [vmem:[#allocation4] sm:$0xff]
    %v260 = vld [vmem:[#allocation4 + $0x8] sm:$0xff]
    %v261 = vld [vmem:[#allocation4 + $0x10] sm:$0xff]
    %v262 = vld [vmem:[#allocation4 + $0x18] sm:$0xff]
    %v263 = vld [vmem:[#allocation4 + $0x20] sm:$0xff]
    %v264 = vld [vmem:[#allocation4 + $0x28] sm:$0xff]
    %v265 = vld [vmem:[#allocation4 + $0x30] sm:$0xff]
    %v266 = vld [vmem:[#allocation4 + $0x38] sm:$0xff]
    %v267 = vld [vmem:[#allocation4 + $0x40] sm:$0xff]
    %v268 = vld [vmem:[#allocation4 + $0x48] sm:$0xff]
    %v269 = vld [vmem:[#allocation4 + $0x50] sm:$0xff]
    %v270 = vld [vmem:[#allocation4 + $0x58] sm:$0xff]
    %v271 = vld [vmem:[#allocation4 + $0x60] sm:$0xff]
    %v272 = vld [vmem:[#allocation4 + $0x68] sm:$0xff]
    %v273 = vld [vmem:[#allocation4 + $0x70] sm:$0xff]
    %v274 = vld [vmem:[#allocation4 + $0x78] sm:$0xff]
    %v275 = vld [vmem:[#allocation4 + $0x80] sm:$0xff]
    %v276 = vld [vmem:[#allocation4 + $0x88] sm:$0xff]
    %v277 = vld [vmem:[#allocation4 + $0x90] sm:$0xff]
    %v278 = vld [vmem:[#allocation4 + $0x98] sm:$0xff]
    %v279 = vld [vmem:[#allocation4 + $0xa0] sm:$0xff]
    %v280 = vld [vmem:[#allocation4 + $0xa8] sm:$0xff]
    %v281 = vld [vmem:[#allocation4 + $0xb0] sm:$0xff]
    %v282 = vld [vmem:[#allocation4 + $0xb8] sm:$0xff]
    %v283 = vld [vmem:[#allocation4 + $0xc0] sm:$0xff]
    %v284 = vld [vmem:[#allocation4 + $0xc8] sm:$0xff]
    %v285 = vld [vmem:[#allocation4 + $0xd0] sm:$0xff]
    %v286 = vld [vmem:[#allocation4 + $0xd8] sm:$0xff]
    %v287 = vld [vmem:[#allocation4 + $0xe0] sm:$0xff]
    %v288 = vld [vmem:[#allocation4 + $0xe8] sm:$0xff]
    %v289 = vld [vmem:[#allocation4 + $0xf0] sm:$0xff]
    %v290 = vld [vmem:[#allocation4 + $0xf8] sm:$0xff]
    %v291 = vld [vmem:[#allocation7] sm:$0xff]
    %v292 = vld [vmem:[#allocation7 + $0x8] sm:$0xff]
    %v293 = vld [vmem:[#allocation7 + $0x10] sm:$0xff]
    %v294 = vld [vmem:[#allocation7 + $0x18] sm:$0xff]
    %v295 = vld [vmem:[#allocation7 + $0x20] sm:$0xff]
    %v296 = vld [vmem:[#allocation7 + $0x28] sm:$0xff]
    %v297 = vld [vmem:[#allocation7 + $0x30] sm:$0xff]
    %v298 = vld [vmem:[#allocation7 + $0x38] sm:$0xff]
    %v299 = vld [vmem:[#allocation7 + $0x40] sm:$0xff]
    %v300 = vld [vmem:[#allocation7 + $0x48] sm:$0xff]
    %v301 = vld [vmem:[#allocation7 + $0x50] sm:$0xff]
    %v302 = vld [vmem:[#allocation7 + $0x58] sm:$0xff]
    %v303 = vld [vmem:[#allocation7 + $0x60] sm:$0xff]
    %v304 = vld [vmem:[#allocation7 + $0x68] sm:$0xff]
    %v305 = vld [vmem:[#allocation7 + $0x70] sm:$0xff]
    %v306 = vld [vmem:[#allocation7 + $0x78] sm:$0xff]
    %v307 = vld [vmem:[#allocation7 + $0x80] sm:$0xff]
    %v308 = vld [vmem:[#allocation7 + $0x88] sm:$0xff]
    %v309 = vld [vmem:[#allocation7 + $0x90] sm:$0xff]
    %v310 = vld [vmem:[#allocation7 + $0x98] sm:$0xff]
    %v311 = vld [vmem:[#allocation7 + $0xa0] sm:$0xff]
    %v312 = vld [vmem:[#allocation7 + $0xa8] sm:$0xff]
    %v313 = vld [vmem:[#allocation7 + $0xb0] sm:$0xff]
    %v314 = vld [vmem:[#allocation7 + $0xb8] sm:$0xff]
    %v315 = vld [vmem:[#allocation7 + $0xc0] sm:$0xff]
    %v316 = vld [vmem:[#allocation7 + $0xc8] sm:$0xff]
    %v317 = vld [vmem:[#allocation7 + $0xd0] sm:$0xff]
    %v318 = vld [vmem:[#allocation7 + $0xd8] sm:$0xff]
    %v319 = vld [vmem:[#allocation7 + $0xe0] sm:$0xff]
    %v320 = vld [vmem:[#allocation7 + $0xe8] sm:$0xff]
    %v321 = vld [vmem:[#allocation7 + $0xf0] sm:$0xff]
    %v322 = vld [vmem:[#allocation7 + $0xf8] sm:$0xff]
    %v323 = vld [vmem:[#allocation9] sm:$0xff]
    %v324 = vld [vmem:[#allocation9 + $0x8] sm:$0xff]
    %v325 = vld [vmem:[#allocation9 + $0x10] sm:$0xff]
    %v326 = vld [vmem:[#allocation9 + $0x18] sm:$0xff]
    %v327 = vld [vmem:[#allocation9 + $0x20] sm:$0xff]
    %v328 = vld [vmem:[#allocation9 + $0x28] sm:$0xff]
    %v329 = vld [vmem:[#allocation9 + $0x30] sm:$0xff]
    %v330 = vld [vmem:[#allocation9 + $0x38] sm:$0xff]
    %v331 = vld [vmem:[#allocation9 + $0x40] sm:$0xff]
    %v332 = vld [vmem:[#allocation9 + $0x48] sm:$0xff]
    %v333 = vld [vmem:[#allocation9 + $0x50] sm:$0xff]
    %v334 = vld [vmem:[#allocation9 + $0x58] sm:$0xff]
    %v335 = vld [vmem:[#allocation9 + $0x60] sm:$0xff]
    %v336 = vld [vmem:[#allocation9 + $0x68] sm:$0xff]
    %v337 = vld [vmem:[#allocation9 + $0x70] sm:$0xff]
    %v338 = vld [vmem:[#allocation9 + $0x78] sm:$0xff]
    %v339 = vld [vmem:[#allocation9 + $0x80] sm:$0xff]
    %v340 = vld [vmem:[#allocation9 + $0x88] sm:$0xff]
    %v341 = vld [vmem:[#allocation9 + $0x90] sm:$0xff]
    %v342 = vld [vmem:[#allocation9 + $0x98] sm:$0xff]
    %v343 = vld [vmem:[#allocation9 + $0xa0] sm:$0xff]
    %v344 = vld [vmem:[#allocation9 + $0xa8] sm:$0xff]
    %v345 = vld [vmem:[#allocation9 + $0xb0] sm:$0xff]
    %v346 = vld [vmem:[#allocation9 + $0xb8] sm:$0xff]
    %v347 = vld [vmem:[#allocation9 + $0xc0] sm:$0xff]
    %v348 = vld [vmem:[#allocation9 + $0xc8] sm:$0xff]
    %v349 = vld [vmem:[#allocation9 + $0xd0] sm:$0xff]
    %v350 = vld [vmem:[#allocation9 + $0xd8] sm:$0xff]
    %v351 = vld [vmem:[#allocation9 + $0xe0] sm:$0xff]
    %v352 = vld [vmem:[#allocation9 + $0xe8] sm:$0xff]
    %v353 = vld [vmem:[#allocation9 + $0xf0] sm:$0xff]
    %v354 = vld [vmem:[#allocation9 + $0xf8] sm:$0xff]
    %v355 = vld [vmem:[%s7] sm:$0x3]
    %v356 = vld [vmem:[%s1] ss:$2 sm:$0x3]
    %v358 = vlaneseq
    %v359 = vshrl.u32 %v358, 7
    %v360 = vsub.s32 0, %v359
    %v361 = vrot.slane %v356, %v360
    %v362 = vlaneseq
    %v363 = vshrl.u32 %v362, 7
    %v364 = vsub.s32 1, %v363
    %v365 = vrot.slane %v356, %v364
    %v368 = vpack.c.bf16 %v361, %v361
    %v369 = vpack.c.bf16 %v365, %v365
    %s370 = scalar_lea.vmem %s1, 1
    %v371 = vld [vmem:[%s370] ss:$2 sm:$0x3]
    %v373 = vlaneseq
    %v374 = vshrl.u32 %v373, 7
    %v375 = vsub.s32 0, %v374
    %v376 = vrot.slane %v371, %v375
    %v377 = vlaneseq
    %v378 = vshrl.u32 %v377, 7
    %v379 = vsub.s32 1, %v378
    %v380 = vrot.slane %v371, %v379
    %v383 = vpack.c.bf16 %v376, %v376
    %v384 = vpack.c.bf16 %v380, %v380
    %v385 = vld [vmem:[#allocation2] ss:$8 sm:$0x3]
    %v418 = vunpack.c.l.b16 %v259
    %v419 = vunpack.c.h.b16 %v259
    %v420 = vunpack.c.l.b16 %v260
    %v421 = vunpack.c.h.b16 %v260
    %v422 = vunpack.c.l.b16 %v261
    %v423 = vunpack.c.h.b16 %v261
    %v424 = vunpack.c.l.b16 %v262
    %v425 = vunpack.c.h.b16 %v262
    %v426 = vunpack.c.l.b16 %v263
    %v427 = vunpack.c.h.b16 %v263
    %v428 = vunpack.c.l.b16 %v264
    %v429 = vunpack.c.h.b16 %v264
    %v430 = vunpack.c.l.b16 %v265
    %v431 = vunpack.c.h.b16 %v265
    %v432 = vunpack.c.l.b16 %v266
    %v433 = vunpack.c.h.b16 %v266
    %v434 = vunpack.c.l.b16 %v267
    %v435 = vunpack.c.h.b16 %v267
    %v436 = vunpack.c.l.b16 %v268
    %v437 = vunpack.c.h.b16 %v268
    %v438 = vunpack.c.l.b16 %v269
    %v439 = vunpack.c.h.b16 %v269
    %v440 = vunpack.c.l.b16 %v270
    %v441 = vunpack.c.h.b16 %v270
    %v442 = vunpack.c.l.b16 %v271
    %v443 = vunpack.c.h.b16 %v271
    %v444 = vunpack.c.l.b16 %v272
    %v445 = vunpack.c.h.b16 %v272
    %v446 = vunpack.c.l.b16 %v273
    %v447 = vunpack.c.h.b16 %v273
    %v448 = vunpack.c.l.b16 %v274
    %v449 = vunpack.c.h.b16 %v274
    %v450 = vunpack.c.l.b16 %v275
    %v451 = vunpack.c.h.b16 %v275
    %v452 = vunpack.c.l.b16 %v276
    %v453 = vunpack.c.h.b16 %v276
    %v454 = vunpack.c.l.b16 %v277
    %v455 = vunpack.c.h.b16 %v277
    %v456 = vunpack.c.l.b16 %v278
    %v457 = vunpack.c.h.b16 %v278
    %v458 = vunpack.c.l.b16 %v279
    %v459 = vunpack.c.h.b16 %v279
    %v460 = vunpack.c.l.b16 %v280
    %v461 = vunpack.c.h.b16 %v280
    %v462 = vunpack.c.l.b16 %v281
    %v463 = vunpack.c.h.b16 %v281
    %v464 = vunpack.c.l.b16 %v282
    %v465 = vunpack.c.h.b16 %v282
    %v466 = vunpack.c.l.b16 %v283
    %v467 = vunpack.c.h.b16 %v283
    %v468 = vunpack.c.l.b16 %v284
    %v469 = vunpack.c.h.b16 %v284
    %v470 = vunpack.c.l.b16 %v285
    %v471 = vunpack.c.h.b16 %v285
    %v472 = vunpack.c.l.b16 %v286
    %v473 = vunpack.c.h.b16 %v286
    %v474 = vunpack.c.l.b16 %v287
    %v475 = vunpack.c.h.b16 %v287
    %v476 = vunpack.c.l.b16 %v288
    %v477 = vunpack.c.h.b16 %v288
    %v478 = vunpack.c.l.b16 %v289
    %v479 = vunpack.c.h.b16 %v289
    %v480 = vunpack.c.l.b16 %v290
    %v481 = vunpack.c.h.b16 %v290
    %v482 = vpack.c.b16 %v420, %v418
    %v483 = vpack.c.b16 %v421, %v419
    %v484 = vpack.c.b16 %v424, %v422
    %v485 = vpack.c.b16 %v425, %v423
    %v486 = vpack.c.b16 %v428, %v426
    %v487 = vpack.c.b16 %v429, %v427
    %v488 = vpack.c.b16 %v432, %v430
    %v489 = vpack.c.b16 %v433, %v431
    %v490 = vpack.c.b16 %v436, %v434
    %v491 = vpack.c.b16 %v437, %v435
    %v492 = vpack.c.b16 %v440, %v438
    %v493 = vpack.c.b16 %v441, %v439
    %v494 = vpack.c.b16 %v444, %v442
    %v495 = vpack.c.b16 %v445, %v443
    %v496 = vpack.c.b16 %v448, %v446
    %v497 = vpack.c.b16 %v449, %v447
    %v498 = vpack.c.b16 %v452, %v450
    %v499 = vpack.c.b16 %v453, %v451
    %v500 = vpack.c.b16 %v456, %v454
    %v501 = vpack.c.b16 %v457, %v455
    %v502 = vpack.c.b16 %v460, %v458
    %v503 = vpack.c.b16 %v461, %v459
    %v504 = vpack.c.b16 %v464, %v462
    %v505 = vpack.c.b16 %v465, %v463
    %v506 = vpack.c.b16 %v468, %v466
    %v507 = vpack.c.b16 %v469, %v467
    %v508 = vpack.c.b16 %v472, %v470
    %v509 = vpack.c.b16 %v473, %v471
    %v510 = vpack.c.b16 %v476, %v474
    %v511 = vpack.c.b16 %v477, %v475
    %v512 = vpack.c.b16 %v480, %v478
    %v513 = vpack.c.b16 %v481, %v479
    %546 = vmatprep.subr.bf16.mxu0 %v497
    %547 = vmatpush1.bf16.msra.mxu0 %v496
    %548 = vmatprep.subr.bf16.mxu0 %v495
    %549 = vmatpush1.bf16.msra.mxu0 %v494
    %550 = vmatprep.subr.bf16.mxu0 %v493
    %551 = vmatpush1.bf16.msra.mxu0 %v492
    %552 = vmatprep.subr.bf16.mxu0 %v491
    %553 = vmatpush1.bf16.msra.mxu0 %v490
    %554 = vmatprep.subr.bf16.mxu0 %v489
    %555 = vmatpush1.bf16.msra.mxu0 %v488
    %556 = vmatprep.subr.bf16.mxu0 %v487
    %557 = vmatpush1.bf16.msra.mxu0 %v486
    %558 = vmatprep.subr.bf16.mxu0 %v485
    %559 = vmatpush1.bf16.msra.mxu0 %v484
    %560 = vmatprep.subr.bf16.mxu0 %v483
    %561 = vmatpush1.bf16.msra.mxu0 %v482
    %562 = vmatprep.subr.bf16.mxu0 %v513
    %563 = vmatpush2.bf16.msra.mxu0 %v512
    %564 = vmatprep.subr.bf16.mxu0 %v511
    %565 = vmatpush2.bf16.msra.mxu0 %v510
    %566 = vmatprep.subr.bf16.mxu0 %v509
    %567 = vmatpush2.bf16.msra.mxu0 %v508
    %568 = vmatprep.subr.bf16.mxu0 %v507
    %569 = vmatpush2.bf16.msra.mxu0 %v506
    %570 = vmatprep.subr.bf16.mxu0 %v505
    %571 = vmatpush2.bf16.msra.mxu0 %v504
    %572 = vmatprep.subr.bf16.mxu0 %v503
    %573 = vmatpush2.bf16.msra.mxu0 %v502
    %574 = vmatprep.subr.bf16.mxu0 %v501
    %575 = vmatpush2.bf16.msra.mxu0 %v500
    %576 = vmatprep.subr.bf16.mxu0 %v499
    %577 = vmatpush2.bf16.msra.mxu0 %v498
    %578 = vmatprep.mubr.bf16.mxu0 %v369
    %579 = vmatmul.mubr.bf16.gmra.mxu0 %v368
    %v580 = vpop.f32.mrf.mxu0
    %v581 = vadd.f32 0.0, %v580
    %v582 = vpop.f32.mrf.mxu0
    %v583 = vadd.f32 0.0, %v582
    %v584 = vpop.f32.mrf.mxu0
    %v585 = vpop.f32.mrf.mxu0
    %586 = vdwg.mxu0
    %v589 = vcombine.low %v581, %v583
    %v591 = vunpack.c.l.s4 1966171168
    %v592 = vunpack.c.0.s8 %v591
    %v593 = vlaneseq
    %v594 = vshrl.u32 %v593, 7
    %v595 = vsub.s32 %v592, %v594
    %v596 = vrot.slane %v589, %v595
    %v598 = vunpack.c.l.s4 1966171168
    %v599 = vunpack.c.0.s8 %v598
    %v600 = vlaneseq
    %v601 = vshrl.u32 %v600, 7
    %v602 = vsub.s32 %v599, %v601
    %v603 = vrot.slane %v596, %v602
    %v605 = vadd.f32 %v385, %v603
    %v606 = vtanh.pop %v605
    %v608 = vlaneseq
    %v609 = vshrl.u32 %v608, 7
    %v610 = vsub.s32 0, %v609
    %v611 = vrot.slane %v606, %v610
    %v612 = vlaneseq
    %v613 = vshrl.u32 %v612, 7
    %v614 = vsub.s32 1, %v613
    %v615 = vrot.slane %v606, %v614
    %v618 = vpack.c.bf16 %v611, %v611
    %v619 = vpack.c.bf16 %v615, %v615
    %v652 = vunpack.c.l.b16 %v323
    %v653 = vunpack.c.h.b16 %v323
    %v654 = vunpack.c.l.b16 %v324
    %v655 = vunpack.c.h.b16 %v324
    %v656 = vunpack.c.l.b16 %v325
    %v657 = vunpack.c.h.b16 %v325
    %v658 = vunpack.c.l.b16 %v326
    %v659 = vunpack.c.h.b16 %v326
    %v660 = vunpack.c.l.b16 %v327
    %v661 = vunpack.c.h.b16 %v327
    %v662 = vunpack.c.l.b16 %v328
    %v663 = vunpack.c.h.b16 %v328
    %v664 = vunpack.c.l.b16 %v329
    %v665 = vunpack.c.h.b16 %v329
    %v666 = vunpack.c.l.b16 %v330
    %v667 = vunpack.c.h.b16 %v330
    %v668 = vunpack.c.l.b16 %v331
    %v669 = vunpack.c.h.b16 %v331
    %v670 = vunpack.c.l.b16 %v332
    %v671 = vunpack.c.h.b16 %v332
    %v672 = vunpack.c.l.b16 %v333
    %v673 = vunpack.c.h.b16 %v333
    %v674 = vunpack.c.l.b16 %v334
    %v675 = vunpack.c.h.b16 %v334
    %v676 = vunpack.c.l.b16 %v335
    %v677 = vunpack.c.h.b16 %v335
    %v678 = vunpack.c.l.b16 %v336
    %v679 = vunpack.c.h.b16 %v336
    %v680 = vunpack.c.l.b16 %v337
    %v681 = vunpack.c.h.b16 %v337
    %v682 = vunpack.c.l.b16 %v338
    %v683 = vunpack.c.h.b16 %v338
    %v684 = vunpack.c.l.b16 %v339
    %v685 = vunpack.c.h.b16 %v339
    %v686 = vunpack.c.l.b16 %v340
    %v687 = vunpack.c.h.b16 %v340
    %v688 = vunpack.c.l.b16 %v341
    %v689 = vunpack.c.h.b16 %v341
    %v690 = vunpack.c.l.b16 %v342
    %v691 = vunpack.c.h.b16 %v342
    %v692 = vunpack.c.l.b16 %v343
    %v693 = vunpack.c.h.b16 %v343
    %v694 = vunpack.c.l.b16 %v344
    %v695 = vunpack.c.h.b16 %v344
    %v696 = vunpack.c.l.b16 %v345
    %v697 = vunpack.c.h.b16 %v345
    %v698 = vunpack.c.l.b16 %v346
    %v699 = vunpack.c.h.b16 %v346
    %v700 = vunpack.c.l.b16 %v347
    %v701 = vunpack.c.h.b16 %v347
    %v702 = vunpack.c.l.b16 %v348
    %v703 = vunpack.c.h.b16 %v348
    %v704 = vunpack.c.l.b16 %v349
    %v705 = vunpack.c.h.b16 %v349
    %v706 = vunpack.c.l.b16 %v350
    %v707 = vunpack.c.h.b16 %v350
    %v708 = vunpack.c.l.b16 %v351
    %v709 = vunpack.c.h.b16 %v351
    %v710 = vunpack.c.l.b16 %v352
    %v711 = vunpack.c.h.b16 %v352
    %v712 = vunpack.c.l.b16 %v353
    %v713 = vunpack.c.h.b16 %v353
    %v714 = vunpack.c.l.b16 %v354
    %v715 = vunpack.c.h.b16 %v354
    %v716 = vpack.c.b16 %v654, %v652
    %v717 = vpack.c.b16 %v655, %v653
    %v718 = vpack.c.b16 %v658, %v656
    %v719 = vpack.c.b16 %v659, %v657
    %v720 = vpack.c.b16 %v662, %v660
    %v721 = vpack.c.b16 %v663, %v661
    %v722 = vpack.c.b16 %v666, %v664
    %v723 = vpack.c.b16 %v667, %v665
    %v724 = vpack.c.b16 %v670, %v668
    %v725 = vpack.c.b16 %v671, %v669
    %v726 = vpack.c.b16 %v674, %v672
    %v727 = vpack.c.b16 %v675, %v673
    %v728 = vpack.c.b16 %v678, %v676
    %v729 = vpack.c.b16 %v679, %v677
    %v730 = vpack.c.b16 %v682, %v680
    %v731 = vpack.c.b16 %v683, %v681
    %v732 = vpack.c.b16 %v686, %v684
    %v733 = vpack.c.b16 %v687, %v685
    %v734 = vpack.c.b16 %v690, %v688
    %v735 = vpack.c.b16 %v691, %v689
    %v736 = vpack.c.b16 %v694, %v692
    %v737 = vpack.c.b16 %v695, %v693
    %v738 = vpack.c.b16 %v698, %v696
    %v739 = vpack.c.b16 %v699, %v697
    %v740 = vpack.c.b16 %v702, %v700
    %v741 = vpack.c.b16 %v703, %v701
    %v742 = vpack.c.b16 %v706, %v704
    %v743 = vpack.c.b16 %v707, %v705
    %v744 = vpack.c.b16 %v710, %v708
    %v745 = vpack.c.b16 %v711, %v709
    %v746 = vpack.c.b16 %v714, %v712
    %v747 = vpack.c.b16 %v715, %v713
    %780 = vmatprep.subr.bf16.mxu0 %v731
    %781 = vmatpush1.bf16.msra.mxu0 %v730
    %782 = vmatprep.subr.bf16.mxu0 %v729
    %783 = vmatpush1.bf16.msra.mxu0 %v728
    %784 = vmatprep.subr.bf16.mxu0 %v727
    %785 = vmatpush1.bf16.msra.mxu0 %v726
    %786 = vmatprep.subr.bf16.mxu0 %v725
    %787 = vmatpush1.bf16.msra.mxu0 %v724
    %788 = vmatprep.subr.bf16.mxu0 %v723
    %789 = vmatpush1.bf16.msra.mxu0 %v722
    %790 = vmatprep.subr.bf16.mxu0 %v721
    %791 = vmatpush1.bf16.msra.mxu0 %v720
    %792 = vmatprep.subr.bf16.mxu0 %v719
    %793 = vmatpush1.bf16.msra.mxu0 %v718
    %794 = vmatprep.subr.bf16.mxu0 %v717
    %795 = vmatpush1.bf16.msra.mxu0 %v716
    %796 = vmatprep.subr.bf16.mxu0 %v747
    %797 = vmatpush2.bf16.msra.mxu0 %v746
    %798 = vmatprep.subr.bf16.mxu0 %v745
    %799 = vmatpush2.bf16.msra.mxu0 %v744
    %800 = vmatprep.subr.bf16.mxu0 %v743
    %801 = vmatpush2.bf16.msra.mxu0 %v742
    %802 = vmatprep.subr.bf16.mxu0 %v741
    %803 = vmatpush2.bf16.msra.mxu0 %v740
    %804 = vmatprep.subr.bf16.mxu0 %v739
    %805 = vmatpush2.bf16.msra.mxu0 %v738
    %806 = vmatprep.subr.bf16.mxu0 %v737
    %807 = vmatpush2.bf16.msra.mxu0 %v736
    %808 = vmatprep.subr.bf16.mxu0 %v735
    %809 = vmatpush2.bf16.msra.mxu0 %v734
    %810 = vmatprep.subr.bf16.mxu0 %v733
    %811 = vmatpush2.bf16.msra.mxu0 %v732
    %812 = vmatprep.mubr.bf16.mxu0 %v384
    %813 = vmatmul.mubr.bf16.gmra.mxu0 %v383
    %v814 = vpop.f32.mrf.mxu0
    %v815 = vadd.f32 0.0, %v814
    %v816 = vpop.f32.mrf.mxu0
    %v817 = vadd.f32 0.0, %v816
    %v818 = vpop.f32.mrf.mxu0
    %v819 = vpop.f32.mrf.mxu0
    %820 = vdwg.mxu0
    %v853 = vunpack.c.l.b16 %v291
    %v854 = vunpack.c.h.b16 %v291
    %v855 = vunpack.c.l.b16 %v292
    %v856 = vunpack.c.h.b16 %v292
    %v857 = vunpack.c.l.b16 %v293
    %v858 = vunpack.c.h.b16 %v293
    %v859 = vunpack.c.l.b16 %v294
    %v860 = vunpack.c.h.b16 %v294
    %v861 = vunpack.c.l.b16 %v295
    %v862 = vunpack.c.h.b16 %v295
    %v863 = vunpack.c.l.b16 %v296
    %v864 = vunpack.c.h.b16 %v296
    %v865 = vunpack.c.l.b16 %v297
    %v866 = vunpack.c.h.b16 %v297
    %v867 = vunpack.c.l.b16 %v298
    %v868 = vunpack.c.h.b16 %v298
    %v869 = vunpack.c.l.b16 %v299
    %v870 = vunpack.c.h.b16 %v299
    %v871 = vunpack.c.l.b16 %v300
    %v872 = vunpack.c.h.b16 %v300
    %v873 = vunpack.c.l.b16 %v301
    %v874 = vunpack.c.h.b16 %v301
    %v875 = vunpack.c.l.b16 %v302
    %v876 = vunpack.c.h.b16 %v302
    %v877 = vunpack.c.l.b16 %v303
    %v878 = vunpack.c.h.b16 %v303
    %v879 = vunpack.c.l.b16 %v304
    %v880 = vunpack.c.h.b16 %v304
    %v881 = vunpack.c.l.b16 %v305
    %v882 = vunpack.c.h.b16 %v305
    %v883 = vunpack.c.l.b16 %v306
    %v884 = vunpack.c.h.b16 %v306
    %v885 = vunpack.c.l.b16 %v307
    %v886 = vunpack.c.h.b16 %v307
    %v887 = vunpack.c.l.b16 %v308
    %v888 = vunpack.c.h.b16 %v308
    %v889 = vunpack.c.l.b16 %v309
    %v890 = vunpack.c.h.b16 %v309
    %v891 = vunpack.c.l.b16 %v310
    %v892 = vunpack.c.h.b16 %v310
    %v893 = vunpack.c.l.b16 %v311
    %v894 = vunpack.c.h.b16 %v311
    %v895 = vunpack.c.l.b16 %v312
    %v896 = vunpack.c.h.b16 %v312
    %v897 = vunpack.c.l.b16 %v313
    %v898 = vunpack.c.h.b16 %v313
    %v899 = vunpack.c.l.b16 %v314
    %v900 = vunpack.c.h.b16 %v314
    %v901 = vunpack.c.l.b16 %v315
    %v902 = vunpack.c.h.b16 %v315
    %v903 = vunpack.c.l.b16 %v316
    %v904 = vunpack.c.h.b16 %v316
    %v905 = vunpack.c.l.b16 %v317
    %v906 = vunpack.c.h.b16 %v317
    %v907 = vunpack.c.l.b16 %v318
    %v908 = vunpack.c.h.b16 %v318
    %v909 = vunpack.c.l.b16 %v319
    %v910 = vunpack.c.h.b16 %v319
    %v911 = vunpack.c.l.b16 %v320
    %v912 = vunpack.c.h.b16 %v320
    %v913 = vunpack.c.l.b16 %v321
    %v914 = vunpack.c.h.b16 %v321
    %v915 = vunpack.c.l.b16 %v322
    %v916 = vunpack.c.h.b16 %v322
    %v917 = vpack.c.b16 %v855, %v853
    %v918 = vpack.c.b16 %v856, %v854
    %v919 = vpack.c.b16 %v859, %v857
    %v920 = vpack.c.b16 %v860, %v858
    %v921 = vpack.c.b16 %v863, %v861
    %v922 = vpack.c.b16 %v864, %v862
    %v923 = vpack.c.b16 %v867, %v865
    %v924 = vpack.c.b16 %v868, %v866
    %v925 = vpack.c.b16 %v871, %v869
    %v926 = vpack.c.b16 %v872, %v870
    %v927 = vpack.c.b16 %v875, %v873
    %v928 = vpack.c.b16 %v876, %v874
    %v929 = vpack.c.b16 %v879, %v877
    %v930 = vpack.c.b16 %v880, %v878
    %v931 = vpack.c.b16 %v883, %v881
    %v932 = vpack.c.b16 %v884, %v882
    %v933 = vpack.c.b16 %v887, %v885
    %v934 = vpack.c.b16 %v888, %v886
    %v935 = vpack.c.b16 %v891, %v889
    %v936 = vpack.c.b16 %v892, %v890
    %v937 = vpack.c.b16 %v895, %v893
    %v938 = vpack.c.b16 %v896, %v894
    %v939 = vpack.c.b16 %v899, %v897
    %v940 = vpack.c.b16 %v900, %v898
    %v941 = vpack.c.b16 %v903, %v901
    %v942 = vpack.c.b16 %v904, %v902
    %v943 = vpack.c.b16 %v907, %v905
    %v944 = vpack.c.b16 %v908, %v906
    %v945 = vpack.c.b16 %v911, %v909
    %v946 = vpack.c.b16 %v912, %v910
    %v947 = vpack.c.b16 %v915, %v913
    %v948 = vpack.c.b16 %v916, %v914
    %981 = vmatprep.subr.bf16.mxu0 %v932
    %982 = vmatpush1.bf16.msra.mxu0 %v931
    %983 = vmatprep.subr.bf16.mxu0 %v930
    %984 = vmatpush1.bf16.msra.mxu0 %v929
    %985 = vmatprep.subr.bf16.mxu0 %v928
    %986 = vmatpush1.bf16.msra.mxu0 %v927
    %987 = vmatprep.subr.bf16.mxu0 %v926
    %988 = vmatpush1.bf16.msra.mxu0 %v925
    %989 = vmatprep.subr.bf16.mxu0 %v924
    %990 = vmatpush1.bf16.msra.mxu0 %v923
    %991 = vmatprep.subr.bf16.mxu0 %v922
    %992 = vmatpush1.bf16.msra.mxu0 %v921
    %993 = vmatprep.subr.bf16.mxu0 %v920
    %994 = vmatpush1.bf16.msra.mxu0 %v919
    %995 = vmatprep.subr.bf16.mxu0 %v918
    %996 = vmatpush1.bf16.msra.mxu0 %v917
    %997 = vmatprep.subr.bf16.mxu0 %v948
    %998 = vmatpush2.bf16.msra.mxu0 %v947
    %999 = vmatprep.subr.bf16.mxu0 %v946
    %1000 = vmatpush2.bf16.msra.mxu0 %v945
    %1001 = vmatprep.subr.bf16.mxu0 %v944
    %1002 = vmatpush2.bf16.msra.mxu0 %v943
    %1003 = vmatprep.subr.bf16.mxu0 %v942
    %1004 = vmatpush2.bf16.msra.mxu0 %v941
    %1005 = vmatprep.subr.bf16.mxu0 %v940
    %1006 = vmatpush2.bf16.msra.mxu0 %v939
    %1007 = vmatprep.subr.bf16.mxu0 %v938
    %1008 = vmatpush2.bf16.msra.mxu0 %v937
    %1009 = vmatprep.subr.bf16.mxu0 %v936
    %1010 = vmatpush2.bf16.msra.mxu0 %v935
    %1011 = vmatprep.subr.bf16.mxu0 %v934
    %1012 = vmatpush2.bf16.msra.mxu0 %v933
    %1013 = vmatprep.mubr.bf16.mxu0 %v619
    %1014 = vmatmul.mubr.bf16.gmra.mxu0 %v618
    %v1015 = vpop.f32.mrf.mxu0
    %v1016 = vadd.f32 %v815, %v1015
    %v1017 = vpop.f32.mrf.mxu0
    %v1018 = vadd.f32 %v817, %v1017
    %v1019 = vpop.f32.mrf.mxu0
    %v1020 = vpop.f32.mrf.mxu0
    %1021 = vdwg.mxu0
    %v1023 = vlaneseq
    %v1024 = vshrl.u32 %v1023, 7
    %v1025 = vsub.s32 0, %v1024
    %v1026 = vrot.slane %v355, %v1025
    %v1027 = vlaneseq
    %v1028 = vshrl.u32 %v1027, 7
    %v1029 = vsub.s32 1, %v1028
    %v1030 = vrot.slane %v355, %v1029
    %v1033 = vadd.f32 %v1016, %v1026
    %v1034 = vadd.f32 %v1018, %v1030
    %v1035 = vtanh.pop %v1033
    %v1036 = vtanh.pop %v1034
    %v1039 = vcombine.low %v1035, %v1036
    %v1041 = vunpack.c.l.s4 1966171168
    %v1042 = vunpack.c.0.s8 %v1041
    %v1043 = vlaneseq
    %v1044 = vshrl.u32 %v1043, 7
    %v1045 = vsub.s32 %v1042, %v1044
    %v1046 = vrot.slane %v1039, %v1045
    %v1048 = vunpack.c.l.s4 1966171168
    %v1049 = vunpack.c.0.s8 %v1048
    %v1050 = vlaneseq
    %v1051 = vshrl.u32 %v1050, 7
    %v1052 = vsub.s32 %v1049, %v1051
    %v1053 = vrot.slane %v1046, %v1052
    %v1055 = vlaneseq
    %vm1056 = vcmp.ge.s32.totalorder %v1055, 0
    %vm1057 = vcmp.lt.s32.totalorder %v1055, 256
    %vm1058 = vmand %vm1056, %vm1057
    %1059 = vst.msk [vmem:[#allocation3] ss:$8 sm:$0x3] %vm1058, %v1053
    %1060 = vst.msk [vmem:[#allocation3] ss:$8 sm:$0x0] %vm1058, %v1053
    %v1061 = vpack.c.bf16 %v1035, %v1035
    %v1062 = vpack.c.bf16 %v1036, %v1036
    %s1063 = scalar_lea.vmem [#allocation2], 1
    %v1064 = vld [vmem:[%s1063] ss:$8 sm:$0x3]
    %1065 = vmatprep.subr.bf16.mxu0 %v497
    %1066 = vmatpush1.bf16.msra.mxu0 %v496
    %1067 = vmatprep.subr.bf16.mxu0 %v495
    %1068 = vmatpush1.bf16.msra.mxu0 %v494
    %1069 = vmatprep.subr.bf16.mxu0 %v493
    %1070 = vmatpush1.bf16.msra.mxu0 %v492
    %1071 = vmatprep.subr.bf16.mxu0 %v491
    %1072 = vmatpush1.bf16.msra.mxu0 %v490
    %1073 = vmatprep.subr.bf16.mxu0 %v489
    %1074 = vmatpush1.bf16.msra.mxu0 %v488
    %1075 = vmatprep.subr.bf16.mxu0 %v487
    %1076 = vmatpush1.bf16.msra.mxu0 %v486
    %1077 = vmatprep.subr.bf16.mxu0 %v485
    %1078 = vmatpush1.bf16.msra.mxu0 %v484
    %1079 = vmatprep.subr.bf16.mxu0 %v483
    %1080 = vmatpush1.bf16.msra.mxu0 %v482
    %1081 = vmatprep.subr.bf16.mxu0 %v513
    %1082 = vmatpush2.bf16.msra.mxu0 %v512
    %1083 = vmatprep.subr.bf16.mxu0 %v511
    %1084 = vmatpush2.bf16.msra.mxu0 %v510
    %1085 = vmatprep.subr.bf16.mxu0 %v509
    %1086 = vmatpush2.bf16.msra.mxu0 %v508
    %1087 = vmatprep.subr.bf16.mxu0 %v507
    %1088 = vmatpush2.bf16.msra.mxu0 %v506
    %1089 = vmatprep.subr.bf16.mxu0 %v505
    %1090 = vmatpush2.bf16.msra.mxu0 %v504
    %1091 = vmatprep.subr.bf16.mxu0 %v503
    %1092 = vmatpush2.bf16.msra.mxu0 %v502
    %1093 = vmatprep.subr.bf16.mxu0 %v501
    %1094 = vmatpush2.bf16.msra.mxu0 %v500
    %1095 = vmatprep.subr.bf16.mxu0 %v499
    %1096 = vmatpush2.bf16.msra.mxu0 %v498
    %1097 = vmatprep.mubr.bf16.mxu0 %v619
    %1098 = vmatmul.mubr.bf16.gmra.mxu0 %v618
    %v1099 = vpop.f32.mrf.mxu0
    %v1100 = vadd.f32 0.0, %v1099
    %v1101 = vpop.f32.mrf.mxu0
    %v1102 = vadd.f32 0.0, %v1101
    %v1103 = vpop.f32.mrf.mxu0
    %v1104 = vpop.f32.mrf.mxu0
    %1105 = vdwg.mxu0
    %v1108 = vcombine.low %v1100, %v1102
    %v1110 = vunpack.c.l.s4 1966171168
    %v1111 = vunpack.c.0.s8 %v1110
    %v1112 = vlaneseq
    %v1113 = vshrl.u32 %v1112, 7
    %v1114 = vsub.s32 %v1111, %v1113
    %v1115 = vrot.slane %v1108, %v1114
    %v1117 = vunpack.c.l.s4 1966171168
    %v1118 = vunpack.c.0.s8 %v1117
    %v1119 = vlaneseq
    %v1120 = vshrl.u32 %v1119, 7
    %v1121 = vsub.s32 %v1118, %v1120
    %v1122 = vrot.slane %v1115, %v1121
    %v1124 = vadd.f32 %v1064, %v1122
    %v1125 = vtanh.pop %v1124
    %v1127 = vlaneseq
    %v1128 = vshrl.u32 %v1127, 7
    %v1129 = vsub.s32 0, %v1128
    %v1130 = vrot.slane %v1125, %v1129
    %v1131 = vlaneseq
    %v1132 = vshrl.u32 %v1131, 7
    %v1133 = vsub.s32 1, %v1132
    %v1134 = vrot.slane %v1125, %v1133
    %v1137 = vpack.c.bf16 %v1130, %v1130
    %v1138 = vpack.c.bf16 %v1134, %v1134
    %1139 = vmatprep.subr.bf16.mxu0 %v731
    %1140 = vmatpush1.bf16.msra.mxu0 %v730
    %1141 = vmatprep.subr.bf16.mxu0 %v729
    %1142 = vmatpush1.bf16.msra.mxu0 %v728
    %1143 = vmatprep.subr.bf16.mxu0 %v727
    %1144 = vmatpush1.bf16.msra.mxu0 %v726
    %1145 = vmatprep.subr.bf16.mxu0 %v725
    %1146 = vmatpush1.bf16.msra.mxu0 %v724
    %1147 = vmatprep.subr.bf16.mxu0 %v723
    %1148 = vmatpush1.bf16.msra.mxu0 %v722
    %1149 = vmatprep.subr.bf16.mxu0 %v721
    %1150 = vmatpush1.bf16.msra.mxu0 %v720
    %1151 = vmatprep.subr.bf16.mxu0 %v719
    %1152 = vmatpush1.bf16.msra.mxu0 %v718
    %1153 = vmatprep.subr.bf16.mxu0 %v717
    %1154 = vmatpush1.bf16.msra.mxu0 %v716
    %1155 = vmatprep.subr.bf16.mxu0 %v747
    %1156 = vmatpush2.bf16.msra.mxu0 %v746
    %1157 = vmatprep.subr.bf16.mxu0 %v745
    %1158 = vmatpush2.bf16.msra.mxu0 %v744
    %1159 = vmatprep.subr.bf16.mxu0 %v743
    %1160 = vmatpush2.bf16.msra.mxu0 %v742
    %1161 = vmatprep.subr.bf16.mxu0 %v741
    %1162 = vmatpush2.bf16.msra.mxu0 %v740
    %1163 = vmatprep.subr.bf16.mxu0 %v739
    %1164 = vmatpush2.bf16.msra.mxu0 %v738
    %1165 = vmatprep.subr.bf16.mxu0 %v737
    %1166 = vmatpush2.bf16.msra.mxu0 %v736
    %1167 = vmatprep.subr.bf16.mxu0 %v735
    %1168 = vmatpush2.bf16.msra.mxu0 %v734
    %1169 = vmatprep.subr.bf16.mxu0 %v733
    %1170 = vmatpush2.bf16.msra.mxu0 %v732
    %1171 = vmatprep.mubr.bf16.mxu0 %v1062
    %1172 = vmatmul.mubr.bf16.gmra.mxu0 %v1061
    %v1173 = vpop.f32.mrf.mxu0
    %v1174 = vadd.f32 0.0, %v1173
    %v1175 = vpop.f32.mrf.mxu0
    %v1176 = vadd.f32 0.0, %v1175
    %v1177 = vpop.f32.mrf.mxu0
    %v1178 = vpop.f32.mrf.mxu0
    %1179 = vdwg.mxu0
    %1180 = vmatprep.subr.bf16.mxu0 %v932
    %1181 = vmatpush1.bf16.msra.mxu0 %v931
    %1182 = vmatprep.subr.bf16.mxu0 %v930
    %1183 = vmatpush1.bf16.msra.mxu0 %v929
    %1184 = vmatprep.subr.bf16.mxu0 %v928
    %1185 = vmatpush1.bf16.msra.mxu0 %v927
    %1186 = vmatprep.subr.bf16.mxu0 %v926
    %1187 = vmatpush1.bf16.msra.mxu0 %v925
    %1188 = vmatprep.subr.bf16.mxu0 %v924
    %1189 = vmatpush1.bf16.msra.mxu0 %v923
    %1190 = vmatprep.subr.bf16.mxu0 %v922
    %1191 = vmatpush1.bf16.msra.mxu0 %v921
    %1192 = vmatprep.subr.bf16.mxu0 %v920
    %1193 = vmatpush1.bf16.msra.mxu0 %v919
    %1194 = vmatprep.subr.bf16.mxu0 %v918
    %1195 = vmatpush1.bf16.msra.mxu0 %v917
    %1196 = vmatprep.subr.bf16.mxu0 %v948
    %1197 = vmatpush2.bf16.msra.mxu0 %v947
    %1198 = vmatprep.subr.bf16.mxu0 %v946
    %1199 = vmatpush2.bf16.msra.mxu0 %v945
    %1200 = vmatprep.subr.bf16.mxu0 %v944
    %1201 = vmatpush2.bf16.msra.mxu0 %v943
    %1202 = vmatprep.subr.bf16.mxu0 %v942
    %1203 = vmatpush2.bf16.msra.mxu0 %v941
    %1204 = vmatprep.subr.bf16.mxu0 %v940
    %1205 = vmatpush2.bf16.msra.mxu0 %v939
    %1206 = vmatprep.subr.bf16.mxu0 %v938
    %1207 = vmatpush2.bf16.msra.mxu0 %v937
    %1208 = vmatprep.subr.bf16.mxu0 %v936
    %1209 = vmatpush2.bf16.msra.mxu0 %v935
    %1210 = vmatprep.subr.bf16.mxu0 %v934
    %1211 = vmatpush2.bf16.msra.mxu0 %v933
    %1212 = vmatprep.mubr.bf16.mxu0 %v1138
    %1213 = vmatmul.mubr.bf16.gmra.mxu0 %v1137
    %v1214 = vpop.f32.mrf.mxu0
    %v1215 = vadd.f32 %v1174, %v1214
    %v1216 = vpop.f32.mrf.mxu0
    %v1217 = vadd.f32 %v1176, %v1216
    %v1218 = vpop.f32.mrf.mxu0
    %v1219 = vpop.f32.mrf.mxu0
    %1220 = vdwg.mxu0
    %v1221 = vadd.f32 %v1215, %v1026
    %v1222 = vadd.f32 %v1217, %v1030
    %v1223 = vtanh.pop %v1221
    %v1224 = vtanh.pop %v1222
    %v1227 = vcombine.low %v1223, %v1224
    %v1229 = vunpack.c.l.s4 1966171168
    %v1230 = vunpack.c.0.s8 %v1229
    %v1231 = vlaneseq
    %v1232 = vshrl.u32 %v1231, 7
    %v1233 = vsub.s32 %v1230, %v1232
    %v1234 = vrot.slane %v1227, %v1233
    %v1236 = vunpack.c.l.s4 1966171168
    %v1237 = vunpack.c.0.s8 %v1236
    %v1238 = vlaneseq
    %v1239 = vshrl.u32 %v1238, 7
    %v1240 = vsub.s32 %v1237, %v1239
    %v1241 = vrot.slane %v1234, %v1240
    %s1243 = scalar_lea.vmem [#allocation3], 1
    %1244 = vst.msk [vmem:[%s1243] ss:$8 sm:$0x3] %vm1058, %v1241
    %1245 = vst.msk [vmem:[%s1243] ss:$8 sm:$0x0] %vm1058, %v1241
    %v1246 = vpack.c.bf16 %v1223, %v1223
    %v1247 = vpack.c.bf16 %v1224, %v1224
    %s1248 = scalar_lea.vmem [#allocation2], 2
    %v1249 = vld [vmem:[%s1248] ss:$8 sm:$0x3]
    %1250 = vmatprep.subr.bf16.mxu0 %v497
    %1251 = vmatpush1.bf16.msra.mxu0 %v496
    %1252 = vmatprep.subr.bf16.mxu0 %v495
    %1253 = vmatpush1.bf16.msra.mxu0 %v494
    %1254 = vmatprep.subr.bf16.mxu0 %v493
    %1255 = vmatpush1.bf16.msra.mxu0 %v492
    %1256 = vmatprep.subr.bf16.mxu0 %v491
    %1257 = vmatpush1.bf16.msra.mxu0 %v490
    %1258 = vmatprep.subr.bf16.mxu0 %v489
    %1259 = vmatpush1.bf16.msra.mxu0 %v488
    %1260 = vmatprep.subr.bf16.mxu0 %v487
    %1261 = vmatpush1.bf16.msra.mxu0 %v486
    %1262 = vmatprep.subr.bf16.mxu0 %v485
    %1263 = vmatpush1.bf16.msra.mxu0 %v484
    %1264 = vmatprep.subr.bf16.mxu0 %v483
    %1265 = vmatpush1.bf16.msra.mxu0 %v482
    %1266 = vmatprep.subr.bf16.mxu0 %v513
    %1267 = vmatpush2.bf16.msra.mxu0 %v512
    %1268 = vmatprep.subr.bf16.mxu0 %v511
    %1269 = vmatpush2.bf16.msra.mxu0 %v510
    %1270 = vmatprep.subr.bf16.mxu0 %v509
    %1271 = vmatpush2.bf16.msra.mxu0 %v508
    %1272 = vmatprep.subr.bf16.mxu0 %v507
    %1273 = vmatpush2.bf16.msra.mxu0 %v506
    %1274 = vmatprep.subr.bf16.mxu0 %v505
    %1275 = vmatpush2.bf16.msra.mxu0 %v504
    %1276 = vmatprep.subr.bf16.mxu0 %v503
    %1277 = vmatpush2.bf16.msra.mxu0 %v502
    %1278 = vmatprep.subr.bf16.mxu0 %v501
    %1279 = vmatpush2.bf16.msra.mxu0 %v500
    %1280 = vmatprep.subr.bf16.mxu0 %v499
    %1281 = vmatpush2.bf16.msra.mxu0 %v498
    %1282 = vmatprep.mubr.bf16.mxu0 %v1138
    %1283 = vmatmul.mubr.bf16.gmra.mxu0 %v1137
    %v1284 = vpop.f32.mrf.mxu0
    %v1285 = vadd.f32 0.0, %v1284
    %v1286 = vpop.f32.mrf.mxu0
    %v1287 = vadd.f32 0.0, %v1286
    %v1288 = vpop.f32.mrf.mxu0
    %v1289 = vpop.f32.mrf.mxu0
    %1290 = vdwg.mxu0
    %v1293 = vcombine.low %v1285, %v1287
    %v1295 = vunpack.c.l.s4 1966171168
    %v1296 = vunpack.c.0.s8 %v1295
    %v1297 = vlaneseq
    %v1298 = vshrl.u32 %v1297, 7
    %v1299 = vsub.s32 %v1296, %v1298
    %v1300 = vrot.slane %v1293, %v1299
    %v1302 = vunpack.c.l.s4 1966171168
    %v1303 = vunpack.c.0.s8 %v1302
    %v1304 = vlaneseq
    %v1305 = vshrl.u32 %v1304, 7
    %v1306 = vsub.s32 %v1303, %v1305
    %v1307 = vrot.slane %v1300, %v1306
    %v1309 = vadd.f32 %v1249, %v1307
    %v1310 = vtanh.pop %v1309
    %v1312 = vlaneseq
    %v1313 = vshrl.u32 %v1312, 7
    %v1314 = vsub.s32 0, %v1313
    %v1315 = vrot.slane %v1310, %v1314
    %v1316 = vlaneseq
    %v1317 = vshrl.u32 %v1316, 7
    %v1318 = vsub.s32 1, %v1317
    %v1319 = vrot.slane %v1310, %v1318
    %v1322 = vpack.c.bf16 %v1315, %v1315
    %v1323 = vpack.c.bf16 %v1319, %v1319
    %1324 = vmatprep.subr.bf16.mxu0 %v731
    %1325 = vmatpush1.bf16.msra.mxu0 %v730
    %1326 = vmatprep.subr.bf16.mxu0 %v729
    %1327 = vmatpush1.bf16.msra.mxu0 %v728
    %1328 = vmatprep.subr.bf16.mxu0 %v727
    %1329 = vmatpush1.bf16.msra.mxu0 %v726
    %1330 = vmatprep.subr.bf16.mxu0 %v725
    %1331 = vmatpush1.bf16.msra.mxu0 %v724
    %1332 = vmatprep.subr.bf16.mxu0 %v723
    %1333 = vmatpush1.bf16.msra.mxu0 %v722
    %1334 = vmatprep.subr.bf16.mxu0 %v721
    %1335 = vmatpush1.bf16.msra.mxu0 %v720
    %1336 = vmatprep.subr.bf16.mxu0 %v719
    %1337 = vmatpush1.bf16.msra.mxu0 %v718
    %1338 = vmatprep.subr.bf16.mxu0 %v717
    %1339 = vmatpush1.bf16.msra.mxu0 %v716
    %1340 = vmatprep.subr.bf16.mxu0 %v747
    %1341 = vmatpush2.bf16.msra.mxu0 %v746
    %1342 = vmatprep.subr.bf16.mxu0 %v745
    %1343 = vmatpush2.bf16.msra.mxu0 %v744
    %1344 = vmatprep.subr.bf16.mxu0 %v743
    %1345 = vmatpush2.bf16.msra.mxu0 %v742
    %1346 = vmatprep.subr.bf16.mxu0 %v741
    %1347 = vmatpush2.bf16.msra.mxu0 %v740
    %1348 = vmatprep.subr.bf16.mxu0 %v739
    %1349 = vmatpush2.bf16.msra.mxu0 %v738
    %1350 = vmatprep.subr.bf16.mxu0 %v737
    %1351 = vmatpush2.bf16.msra.mxu0 %v736
    %1352 = vmatprep.subr.bf16.mxu0 %v735
    %1353 = vmatpush2.bf16.msra.mxu0 %v734
    %1354 = vmatprep.subr.bf16.mxu0 %v733
    %1355 = vmatpush2.bf16.msra.mxu0 %v732
    %1356 = vmatprep.mubr.bf16.mxu0 %v1247
    %1357 = vmatmul.mubr.bf16.gmra.mxu0 %v1246
    %v1358 = vpop.f32.mrf.mxu0
    %v1359 = vadd.f32 0.0, %v1358
    %v1360 = vpop.f32.mrf.mxu0
    %v1361 = vadd.f32 0.0, %v1360
    %v1362 = vpop.f32.mrf.mxu0
    %v1363 = vpop.f32.mrf.mxu0
    %1364 = vdwg.mxu0
    %1365 = vmatprep.subr.bf16.mxu0 %v932
    %1366 = vmatpush1.bf16.msra.mxu0 %v931
    %1367 = vmatprep.subr.bf16.mxu0 %v930
    %1368 = vmatpush1.bf16.msra.mxu0 %v929
    %1369 = vmatprep.subr.bf16.mxu0 %v928
    %1370 = vmatpush1.bf16.msra.mxu0 %v927
    %1371 = vmatprep.subr.bf16.mxu0 %v926
    %1372 = vmatpush1.bf16.msra.mxu0 %v925
    %1373 = vmatprep.subr.bf16.mxu0 %v924
    %1374 = vmatpush1.bf16.msra.mxu0 %v923
    %1375 = vmatprep.subr.bf16.mxu0 %v922
    %1376 = vmatpush1.bf16.msra.mxu0 %v921
    %1377 = vmatprep.subr.bf16.mxu0 %v920
    %1378 = vmatpush1.bf16.msra.mxu0 %v919
    %1379 = vmatprep.subr.bf16.mxu0 %v918
    %1380 = vmatpush1.bf16.msra.mxu0 %v917
    %1381 = vmatprep.subr.bf16.mxu0 %v948
    %1382 = vmatpush2.bf16.msra.mxu0 %v947
    %1383 = vmatprep.subr.bf16.mxu0 %v946
    %1384 = vmatpush2.bf16.msra.mxu0 %v945
    %1385 = vmatprep.subr.bf16.mxu0 %v944
    %1386 = vmatpush2.bf16.msra.mxu0 %v943
    %1387 = vmatprep.subr.bf16.mxu0 %v942
    %1388 = vmatpush2.bf16.msra.mxu0 %v941
    %1389 = vmatprep.subr.bf16.mxu0 %v940
    %1390 = vmatpush2.bf16.msra.mxu0 %v939
    %1391 = vmatprep.subr.bf16.mxu0 %v938
    %1392 = vmatpush2.bf16.msra.mxu0 %v937
    %1393 = vmatprep.subr.bf16.mxu0 %v936
    %1394 = vmatpush2.bf16.msra.mxu0 %v935
    %1395 = vmatprep.subr.bf16.mxu0 %v934
    %1396 = vmatpush2.bf16.msra.mxu0 %v933
    %1397 = vmatprep.mubr.bf16.mxu0 %v1323
    %1398 = vmatmul.mubr.bf16.gmra.mxu0 %v1322
    %v1399 = vpop.f32.mrf.mxu0
    %v1400 = vadd.f32 %v1359, %v1399
    %v1401 = vpop.f32.mrf.mxu0
    %v1402 = vadd.f32 %v1361, %v1401
    %v1403 = vpop.f32.mrf.mxu0
    %v1404 = vpop.f32.mrf.mxu0
    %1405 = vdwg.mxu0
    %v1406 = vadd.f32 %v1400, %v1026
    %v1407 = vadd.f32 %v1402, %v1030
    %v1408 = vtanh.pop %v1406
    %v1409 = vtanh.pop %v1407
    %v1412 = vcombine.low %v1408, %v1409
    %v1414 = vunpack.c.l.s4 1966171168
    %v1415 = vunpack.c.0.s8 %v1414
    %v1416 = vlaneseq
    %v1417 = vshrl.u32 %v1416, 7
    %v1418 = vsub.s32 %v1415, %v1417
    %v1419 = vrot.slane %v1412, %v1418
    %v1421 = vunpack.c.l.s4 1966171168
    %v1422 = vunpack.c.0.s8 %v1421
    %v1423 = vlaneseq
    %v1424 = vshrl.u32 %v1423, 7
    %v1425 = vsub.s32 %v1422, %v1424
    %v1426 = vrot.slane %v1419, %v1425
    %s1428 = scalar_lea.vmem [#allocation3], 2
    %1429 = vst.msk [vmem:[%s1428] ss:$8 sm:$0x3] %vm1058, %v1426
    %1430 = vst.msk [vmem:[%s1428] ss:$8 sm:$0x0] %vm1058, %v1426
    %v1431 = vpack.c.bf16 %v1408, %v1408
    %v1432 = vpack.c.bf16 %v1409, %v1409
    %s1433 = scalar_lea.vmem [#allocation2], 3
    %v1434 = vld [vmem:[%s1433] ss:$8 sm:$0x3]
    %1435 = vmatprep.subr.bf16.mxu0 %v497
    %1436 = vmatpush1.bf16.msra.mxu0 %v496
    %1437 = vmatprep.subr.bf16.mxu0 %v495
    %1438 = vmatpush1.bf16.msra.mxu0 %v494
    %1439 = vmatprep.subr.bf16.mxu0 %v493
    %1440 = vmatpush1.bf16.msra.mxu0 %v492
    %1441 = vmatprep.subr.bf16.mxu0 %v491
    %1442 = vmatpush1.bf16.msra.mxu0 %v490
    %1443 = vmatprep.subr.bf16.mxu0 %v489
    %1444 = vmatpush1.bf16.msra.mxu0 %v488
    %1445 = vmatprep.subr.bf16.mxu0 %v487
    %1446 = vmatpush1.bf16.msra.mxu0 %v486
    %1447 = vmatprep.subr.bf16.mxu0 %v485
    %1448 = vmatpush1.bf16.msra.mxu0 %v484
    %1449 = vmatprep.subr.bf16.mxu0 %v483
    %1450 = vmatpush1.bf16.msra.mxu0 %v482
    %1451 = vmatprep.subr.bf16.mxu0 %v513
    %1452 = vmatpush2.bf16.msra.mxu0 %v512
    %1453 = vmatprep.subr.bf16.mxu0 %v511
    %1454 = vmatpush2.bf16.msra.mxu0 %v510
    %1455 = vmatprep.subr.bf16.mxu0 %v509
    %1456 = vmatpush2.bf16.msra.mxu0 %v508
    %1457 = vmatprep.subr.bf16.mxu0 %v507
    %1458 = vmatpush2.bf16.msra.mxu0 %v506
    %1459 = vmatprep.subr.bf16.mxu0 %v505
    %1460 = vmatpush2.bf16.msra.mxu0 %v504
    %1461 = vmatprep.subr.bf16.mxu0 %v503
    %1462 = vmatpush2.bf16.msra.mxu0 %v502
    %1463 = vmatprep.subr.bf16.mxu0 %v501
    %1464 = vmatpush2.bf16.msra.mxu0 %v500
    %1465 = vmatprep.subr.bf16.mxu0 %v499
    %1466 = vmatpush2.bf16.msra.mxu0 %v498
    %1467 = vmatprep.mubr.bf16.mxu0 %v1323
    %1468 = vmatmul.mubr.bf16.gmra.mxu0 %v1322
    %v1469 = vpop.f32.mrf.mxu0
    %v1470 = vadd.f32 0.0, %v1469
    %v1471 = vpop.f32.mrf.mxu0
    %v1472 = vadd.f32 0.0, %v1471
    %v1473 = vpop.f32.mrf.mxu0
    %v1474 = vpop.f32.mrf.mxu0
    %1475 = vdwg.mxu0
    %v1478 = vcombine.low %v1470, %v1472
    %v1480 = vunpack.c.l.s4 1966171168
    %v1481 = vunpack.c.0.s8 %v1480
    %v1482 = vlaneseq
    %v1483 = vshrl.u32 %v1482, 7
    %v1484 = vsub.s32 %v1481, %v1483
    %v1485 = vrot.slane %v1478, %v1484
    %v1487 = vunpack.c.l.s4 1966171168
    %v1488 = vunpack.c.0.s8 %v1487
    %v1489 = vlaneseq
    %v1490 = vshrl.u32 %v1489, 7
    %v1491 = vsub.s32 %v1488, %v1490
    %v1492 = vrot.slane %v1485, %v1491
    %v1494 = vadd.f32 %v1434, %v1492
    %v1495 = vtanh.pop %v1494
    %v1497 = vlaneseq
    %v1498 = vshrl.u32 %v1497, 7
    %v1499 = vsub.s32 0, %v1498
    %v1500 = vrot.slane %v1495, %v1499
    %v1501 = vlaneseq
    %v1502 = vshrl.u32 %v1501, 7
    %v1503 = vsub.s32 1, %v1502
    %v1504 = vrot.slane %v1495, %v1503
    %v1507 = vpack.c.bf16 %v1500, %v1500
    %v1508 = vpack.c.bf16 %v1504, %v1504
    %1509 = vmatprep.subr.bf16.mxu0 %v731
    %1510 = vmatpush1.bf16.msra.mxu0 %v730
    %1511 = vmatprep.subr.bf16.mxu0 %v729
    %1512 = vmatpush1.bf16.msra.mxu0 %v728
    %1513 = vmatprep.subr.bf16.mxu0 %v727
    %1514 = vmatpush1.bf16.msra.mxu0 %v726
    %1515 = vmatprep.subr.bf16.mxu0 %v725
    %1516 = vmatpush1.bf16.msra.mxu0 %v724
    %1517 = vmatprep.subr.bf16.mxu0 %v723
    %1518 = vmatpush1.bf16.msra.mxu0 %v722
    %1519 = vmatprep.subr.bf16.mxu0 %v721
    %1520 = vmatpush1.bf16.msra.mxu0 %v720
    %1521 = vmatprep.subr.bf16.mxu0 %v719
    %1522 = vmatpush1.bf16.msra.mxu0 %v718
    %1523 = vmatprep.subr.bf16.mxu0 %v717
    %1524 = vmatpush1.bf16.msra.mxu0 %v716
    %1525 = vmatprep.subr.bf16.mxu0 %v747
    %1526 = vmatpush2.bf16.msra.mxu0 %v746
    %1527 = vmatprep.subr.bf16.mxu0 %v745
    %1528 = vmatpush2.bf16.msra.mxu0 %v744
    %1529 = vmatprep.subr.bf16.mxu0 %v743
    %1530 = vmatpush2.bf16.msra.mxu0 %v742
    %1531 = vmatprep.subr.bf16.mxu0 %v741
    %1532 = vmatpush2.bf16.msra.mxu0 %v740
    %1533 = vmatprep.subr.bf16.mxu0 %v739
    %1534 = vmatpush2.bf16.msra.mxu0 %v738
    %1535 = vmatprep.subr.bf16.mxu0 %v737
    %1536 = vmatpush2.bf16.msra.mxu0 %v736
    %1537 = vmatprep.subr.bf16.mxu0 %v735
    %1538 = vmatpush2.bf16.msra.mxu0 %v734
    %1539 = vmatprep.subr.bf16.mxu0 %v733
    %1540 = vmatpush2.bf16.msra.mxu0 %v732
    %1541 = vmatprep.mubr.bf16.mxu0 %v1432
    %1542 = vmatmul.mubr.bf16.gmra.mxu0 %v1431
    %v1543 = vpop.f32.mrf.mxu0
    %v1544 = vadd.f32 0.0, %v1543
    %v1545 = vpop.f32.mrf.mxu0
    %v1546 = vadd.f32 0.0, %v1545
    %v1547 = vpop.f32.mrf.mxu0
    %v1548 = vpop.f32.mrf.mxu0
    %1549 = vdwg.mxu0
    %1550 = vmatprep.subr.bf16.mxu0 %v932
    %1551 = vmatpush1.bf16.msra.mxu0 %v931
    %1552 = vmatprep.subr.bf16.mxu0 %v930
    %1553 = vmatpush1.bf16.msra.mxu0 %v929
    %1554 = vmatprep.subr.bf16.mxu0 %v928
    %1555 = vmatpush1.bf16.msra.mxu0 %v927
    %1556 = vmatprep.subr.bf16.mxu0 %v926
    %1557 = vmatpush1.bf16.msra.mxu0 %v925
    %1558 = vmatprep.subr.bf16.mxu0 %v924
    %1559 = vmatpush1.bf16.msra.mxu0 %v923
    %1560 = vmatprep.subr.bf16.mxu0 %v922
    %1561 = vmatpush1.bf16.msra.mxu0 %v921
    %1562 = vmatprep.subr.bf16.mxu0 %v920
    %1563 = vmatpush1.bf16.msra.mxu0 %v919
    %1564 = vmatprep.subr.bf16.mxu0 %v918
    %1565 = vmatpush1.bf16.msra.mxu0 %v917
    %1566 = vmatprep.subr.bf16.mxu0 %v948
    %1567 = vmatpush2.bf16.msra.mxu0 %v947
    %1568 = vmatprep.subr.bf16.mxu0 %v946
    %1569 = vmatpush2.bf16.msra.mxu0 %v945
    %1570 = vmatprep.subr.bf16.mxu0 %v944
    %1571 = vmatpush2.bf16.msra.mxu0 %v943
    %1572 = vmatprep.subr.bf16.mxu0 %v942
    %1573 = vmatpush2.bf16.msra.mxu0 %v941
    %1574 = vmatprep.subr.bf16.mxu0 %v940
    %1575 = vmatpush2.bf16.msra.mxu0 %v939
    %1576 = vmatprep.subr.bf16.mxu0 %v938
    %1577 = vmatpush2.bf16.msra.mxu0 %v937
    %1578 = vmatprep.subr.bf16.mxu0 %v936
    %1579 = vmatpush2.bf16.msra.mxu0 %v935
    %1580 = vmatprep.subr.bf16.mxu0 %v934
    %1581 = vmatpush2.bf16.msra.mxu0 %v933
    %1582 = vmatprep.mubr.bf16.mxu0 %v1508
    %1583 = vmatmul.mubr.bf16.gmra.mxu0 %v1507
    %v1584 = vpop.f32.mrf.mxu0
    %v1585 = vadd.f32 %v1544, %v1584
    %v1586 = vpop.f32.mrf.mxu0
    %v1587 = vadd.f32 %v1546, %v1586
    %v1588 = vpop.f32.mrf.mxu0
    %v1589 = vpop.f32.mrf.mxu0
    %1590 = vdwg.mxu0
    %v1591 = vadd.f32 %v1585, %v1026
    %v1592 = vadd.f32 %v1587, %v1030
    %v1593 = vtanh.pop %v1591
    %v1594 = vtanh.pop %v1592
    %v1597 = vcombine.low %v1593, %v1594
    %v1599 = vunpack.c.l.s4 1966171168
    %v1600 = vunpack.c.0.s8 %v1599
    %v1601 = vlaneseq
    %v1602 = vshrl.u32 %v1601, 7
    %v1603 = vsub.s32 %v1600, %v1602
    %v1604 = vrot.slane %v1597, %v1603
    %v1606 = vunpack.c.l.s4 1966171168
    %v1607 = vunpack.c.0.s8 %v1606
    %v1608 = vlaneseq
    %v1609 = vshrl.u32 %v1608, 7
    %v1610 = vsub.s32 %v1607, %v1609
    %v1611 = vrot.slane %v1604, %v1610
    %s1613 = scalar_lea.vmem [#allocation3], 3
    %1614 = vst.msk [vmem:[%s1613] ss:$8 sm:$0x3] %vm1058, %v1611
    %1615 = vst.msk [vmem:[%s1613] ss:$8 sm:$0x0] %vm1058, %v1611
    %v1616 = vpack.c.bf16 %v1593, %v1593
    %v1617 = vpack.c.bf16 %v1594, %v1594
    %s1618 = scalar_lea.vmem [#allocation2], 4
    %v1619 = vld [vmem:[%s1618] ss:$8 sm:$0x3]
    %1620 = vmatprep.subr.bf16.mxu0 %v497
    %1621 = vmatpush1.bf16.msra.mxu0 %v496
    %1622 = vmatprep.subr.bf16.mxu0 %v495
    %1623 = vmatpush1.bf16.msra.mxu0 %v494
    %1624 = vmatprep.subr.bf16.mxu0 %v493
    %1625 = vmatpush1.bf16.msra.mxu0 %v492
    %1626 = vmatprep.subr.bf16.mxu0 %v491
    %1627 = vmatpush1.bf16.msra.mxu0 %v490
    %1628 = vmatprep.subr.bf16.mxu0 %v489
    %1629 = vmatpush1.bf16.msra.mxu0 %v488
    %1630 = vmatprep.subr.bf16.mxu0 %v487
    %1631 = vmatpush1.bf16.msra.mxu0 %v486
    %1632 = vmatprep.subr.bf16.mxu0 %v485
    %1633 = vmatpush1.bf16.msra.mxu0 %v484
    %1634 = vmatprep.subr.bf16.mxu0 %v483
    %1635 = vmatpush1.bf16.msra.mxu0 %v482
    %1636 = vmatprep.subr.bf16.mxu0 %v513
    %1637 = vmatpush2.bf16.msra.mxu0 %v512
    %1638 = vmatprep.subr.bf16.mxu0 %v511
    %1639 = vmatpush2.bf16.msra.mxu0 %v510
    %1640 = vmatprep.subr.bf16.mxu0 %v509
    %1641 = vmatpush2.bf16.msra.mxu0 %v508
    %1642 = vmatprep.subr.bf16.mxu0 %v507
    %1643 = vmatpush2.bf16.msra.mxu0 %v506
    %1644 = vmatprep.subr.bf16.mxu0 %v505
    %1645 = vmatpush2.bf16.msra.mxu0 %v504
    %1646 = vmatprep.subr.bf16.mxu0 %v503
    %1647 = vmatpush2.bf16.msra.mxu0 %v502
    %1648 = vmatprep.subr.bf16.mxu0 %v501
    %1649 = vmatpush2.bf16.msra.mxu0 %v500
    %1650 = vmatprep.subr.bf16.mxu0 %v499
    %1651 = vmatpush2.bf16.msra.mxu0 %v498
    %1652 = vmatprep.mubr.bf16.mxu0 %v1508
    %1653 = vmatmul.mubr.bf16.gmra.mxu0 %v1507
    %v1654 = vpop.f32.mrf.mxu0
    %v1655 = vadd.f32 0.0, %v1654
    %v1656 = vpop.f32.mrf.mxu0
    %v1657 = vadd.f32 0.0, %v1656
    %v1658 = vpop.f32.mrf.mxu0
    %v1659 = vpop.f32.mrf.mxu0
    %1660 = vdwg.mxu0
    %v1663 = vcombine.low %v1655, %v1657
    %v1665 = vunpack.c.l.s4 1966171168
    %v1666 = vunpack.c.0.s8 %v1665
    %v1667 = vlaneseq
    %v1668 = vshrl.u32 %v1667, 7
    %v1669 = vsub.s32 %v1666, %v1668
    %v1670 = vrot.slane %v1663, %v1669
    %v1672 = vunpack.c.l.s4 1966171168
    %v1673 = vunpack.c.0.s8 %v1672
    %v1674 = vlaneseq
    %v1675 = vshrl.u32 %v1674, 7
    %v1676 = vsub.s32 %v1673, %v1675
    %v1677 = vrot.slane %v1670, %v1676
    %v1679 = vadd.f32 %v1619, %v1677
    %v1680 = vtanh.pop %v1679
    %v1682 = vlaneseq
    %v1683 = vshrl.u32 %v1682, 7
    %v1684 = vsub.s32 0, %v1683
    %v1685 = vrot.slane %v1680, %v1684
    %v1686 = vlaneseq
    %v1687 = vshrl.u32 %v1686, 7
    %v1688 = vsub.s32 1, %v1687
    %v1689 = vrot.slane %v1680, %v1688
    %v1692 = vpack.c.bf16 %v1685, %v1685
    %v1693 = vpack.c.bf16 %v1689, %v1689
    %1694 = vmatprep.subr.bf16.mxu0 %v731
    %1695 = vmatpush1.bf16.msra.mxu0 %v730
    %1696 = vmatprep.subr.bf16.mxu0 %v729
    %1697 = vmatpush1.bf16.msra.mxu0 %v728
    %1698 = vmatprep.subr.bf16.mxu0 %v727
    %1699 = vmatpush1.bf16.msra.mxu0 %v726
    %1700 = vmatprep.subr.bf16.mxu0 %v725
    %1701 = vmatpush1.bf16.msra.mxu0 %v724
    %1702 = vmatprep.subr.bf16.mxu0 %v723
    %1703 = vmatpush1.bf16.msra.mxu0 %v722
    %1704 = vmatprep.subr.bf16.mxu0 %v721
    %1705 = vmatpush1.bf16.msra.mxu0 %v720
    %1706 = vmatprep.subr.bf16.mxu0 %v719
    %1707 = vmatpush1.bf16.msra.mxu0 %v718
    %1708 = vmatprep.subr.bf16.mxu0 %v717
    %1709 = vmatpush1.bf16.msra.mxu0 %v716
    %1710 = vmatprep.subr.bf16.mxu0 %v747
    %1711 = vmatpush2.bf16.msra.mxu0 %v746
    %1712 = vmatprep.subr.bf16.mxu0 %v745
    %1713 = vmatpush2.bf16.msra.mxu0 %v744
    %1714 = vmatprep.subr.bf16.mxu0 %v743
    %1715 = vmatpush2.bf16.msra.mxu0 %v742
    %1716 = vmatprep.subr.bf16.mxu0 %v741
    %1717 = vmatpush2.bf16.msra.mxu0 %v740
    %1718 = vmatprep.subr.bf16.mxu0 %v739
    %1719 = vmatpush2.bf16.msra.mxu0 %v738
    %1720 = vmatprep.subr.bf16.mxu0 %v737
    %1721 = vmatpush2.bf16.msra.mxu0 %v736
    %1722 = vmatprep.subr.bf16.mxu0 %v735
    %1723 = vmatpush2.bf16.msra.mxu0 %v734
    %1724 = vmatprep.subr.bf16.mxu0 %v733
    %1725 = vmatpush2.bf16.msra.mxu0 %v732
    %1726 = vmatprep.mubr.bf16.mxu0 %v1617
    %1727 = vmatmul.mubr.bf16.gmra.mxu0 %v1616
    %v1728 = vpop.f32.mrf.mxu0
    %v1729 = vadd.f32 0.0, %v1728
    %v1730 = vpop.f32.mrf.mxu0
    %v1731 = vadd.f32 0.0, %v1730
    %v1732 = vpop.f32.mrf.mxu0
    %v1733 = vpop.f32.mrf.mxu0
    %1734 = vdwg.mxu0
    %1735 = vmatprep.subr.bf16.mxu0 %v932
    %1736 = vmatpush1.bf16.msra.mxu0 %v931
    %1737 = vmatprep.subr.bf16.mxu0 %v930
    %1738 = vmatpush1.bf16.msra.mxu0 %v929
    %1739 = vmatprep.subr.bf16.mxu0 %v928
    %1740 = vmatpush1.bf16.msra.mxu0 %v927
    %1741 = vmatprep.subr.bf16.mxu0 %v926
    %1742 = vmatpush1.bf16.msra.mxu0 %v925
    %1743 = vmatprep.subr.bf16.mxu0 %v924
    %1744 = vmatpush1.bf16.msra.mxu0 %v923
    %1745 = vmatprep.subr.bf16.mxu0 %v922
    %1746 = vmatpush1.bf16.msra.mxu0 %v921
    %1747 = vmatprep.subr.bf16.mxu0 %v920
    %1748 = vmatpush1.bf16.msra.mxu0 %v919
    %1749 = vmatprep.subr.bf16.mxu0 %v918
    %1750 = vmatpush1.bf16.msra.mxu0 %v917
    %1751 = vmatprep.subr.bf16.mxu0 %v948
    %1752 = vmatpush2.bf16.msra.mxu0 %v947
    %1753 = vmatprep.subr.bf16.mxu0 %v946
    %1754 = vmatpush2.bf16.msra.mxu0 %v945
    %1755 = vmatprep.subr.bf16.mxu0 %v944
    %1756 = vmatpush2.bf16.msra.mxu0 %v943
    %1757 = vmatprep.subr.bf16.mxu0 %v942
    %1758 = vmatpush2.bf16.msra.mxu0 %v941
    %1759 = vmatprep.subr.bf16.mxu0 %v940
    %1760 = vmatpush2.bf16.msra.mxu0 %v939
    %1761 = vmatprep.subr.bf16.mxu0 %v938
    %1762 = vmatpush2.bf16.msra.mxu0 %v937
    %1763 = vmatprep.subr.bf16.mxu0 %v936
    %1764 = vmatpush2.bf16.msra.mxu0 %v935
    %1765 = vmatprep.subr.bf16.mxu0 %v934
    %1766 = vmatpush2.bf16.msra.mxu0 %v933
    %1767 = vmatprep.mubr.bf16.mxu0 %v1693
    %1768 = vmatmul.mubr.bf16.gmra.mxu0 %v1692
    %v1769 = vpop.f32.mrf.mxu0
    %v1770 = vadd.f32 %v1729, %v1769
    %v1771 = vpop.f32.mrf.mxu0
    %v1772 = vadd.f32 %v1731, %v1771
    %v1773 = vpop.f32.mrf.mxu0
    %v1774 = vpop.f32.mrf.mxu0
    %1775 = vdwg.mxu0
    %v1776 = vadd.f32 %v1770, %v1026
    %v1777 = vadd.f32 %v1772, %v1030
    %v1778 = vtanh.pop %v1776
    %v1779 = vtanh.pop %v1777
    %v1782 = vcombine.low %v1778, %v1779
    %v1784 = vunpack.c.l.s4 1966171168
    %v1785 = vunpack.c.0.s8 %v1784
    %v1786 = vlaneseq
    %v1787 = vshrl.u32 %v1786, 7
    %v1788 = vsub.s32 %v1785, %v1787
    %v1789 = vrot.slane %v1782, %v1788
    %v1791 = vunpack.c.l.s4 1966171168
    %v1792 = vunpack.c.0.s8 %v1791
    %v1793 = vlaneseq
    %v1794 = vshrl.u32 %v1793, 7
    %v1795 = vsub.s32 %v1792, %v1794
    %v1796 = vrot.slane %v1789, %v1795
    %s1798 = scalar_lea.vmem [#allocation3], 4
    %1799 = vst.msk [vmem:[%s1798] ss:$8 sm:$0x3] %vm1058, %v1796
    %1800 = vst.msk [vmem:[%s1798] ss:$8 sm:$0x0] %vm1058, %v1796
    %v1801 = vpack.c.bf16 %v1778, %v1778
    %v1802 = vpack.c.bf16 %v1779, %v1779
    %s1803 = scalar_lea.vmem [#allocation2], 5
    %v1804 = vld [vmem:[%s1803] ss:$8 sm:$0x3]
    %1805 = vmatprep.subr.bf16.mxu0 %v497
    %1806 = vmatpush1.bf16.msra.mxu0 %v496
    %1807 = vmatprep.subr.bf16.mxu0 %v495
    %1808 = vmatpush1.bf16.msra.mxu0 %v494
    %1809 = vmatprep.subr.bf16.mxu0 %v493
    %1810 = vmatpush1.bf16.msra.mxu0 %v492
    %1811 = vmatprep.subr.bf16.mxu0 %v491
    %1812 = vmatpush1.bf16.msra.mxu0 %v490
    %1813 = vmatprep.subr.bf16.mxu0 %v489
    %1814 = vmatpush1.bf16.msra.mxu0 %v488
    %1815 = vmatprep.subr.bf16.mxu0 %v487
    %1816 = vmatpush1.bf16.msra.mxu0 %v486
    %1817 = vmatprep.subr.bf16.mxu0 %v485
    %1818 = vmatpush1.bf16.msra.mxu0 %v484
    %1819 = vmatprep.subr.bf16.mxu0 %v483
    %1820 = vmatpush1.bf16.msra.mxu0 %v482
    %1821 = vmatprep.subr.bf16.mxu0 %v513
    %1822 = vmatpush2.bf16.msra.mxu0 %v512
    %1823 = vmatprep.subr.bf16.mxu0 %v511
    %1824 = vmatpush2.bf16.msra.mxu0 %v510
    %1825 = vmatprep.subr.bf16.mxu0 %v509
    %1826 = vmatpush2.bf16.msra.mxu0 %v508
    %1827 = vmatprep.subr.bf16.mxu0 %v507
    %1828 = vmatpush2.bf16.msra.mxu0 %v506
    %1829 = vmatprep.subr.bf16.mxu0 %v505
    %1830 = vmatpush2.bf16.msra.mxu0 %v504
    %1831 = vmatprep.subr.bf16.mxu0 %v503
    %1832 = vmatpush2.bf16.msra.mxu0 %v502
    %1833 = vmatprep.subr.bf16.mxu0 %v501
    %1834 = vmatpush2.bf16.msra.mxu0 %v500
    %1835 = vmatprep.subr.bf16.mxu0 %v499
    %1836 = vmatpush2.bf16.msra.mxu0 %v498
    %1837 = vmatprep.mubr.bf16.mxu0 %v1693
    %1838 = vmatmul.mubr.bf16.gmra.mxu0 %v1692
    %v1839 = vpop.f32.mrf.mxu0
    %v1840 = vadd.f32 0.0, %v1839
    %v1841 = vpop.f32.mrf.mxu0
    %v1842 = vadd.f32 0.0, %v1841
    %v1843 = vpop.f32.mrf.mxu0
    %v1844 = vpop.f32.mrf.mxu0
    %1845 = vdwg.mxu0
    %v1848 = vcombine.low %v1840, %v1842
    %v1850 = vunpack.c.l.s4 1966171168
    %v1851 = vunpack.c.0.s8 %v1850
    %v1852 = vlaneseq
    %v1853 = vshrl.u32 %v1852, 7
    %v1854 = vsub.s32 %v1851, %v1853
    %v1855 = vrot.slane %v1848, %v1854
    %v1857 = vunpack.c.l.s4 1966171168
    %v1858 = vunpack.c.0.s8 %v1857
    %v1859 = vlaneseq
    %v1860 = vshrl.u32 %v1859, 7
    %v1861 = vsub.s32 %v1858, %v1860
    %v1862 = vrot.slane %v1855, %v1861
    %v1864 = vadd.f32 %v1804, %v1862
    %v1865 = vtanh.pop %v1864
    %v1867 = vlaneseq
    %v1868 = vshrl.u32 %v1867, 7
    %v1869 = vsub.s32 0, %v1868
    %v1870 = vrot.slane %v1865, %v1869
    %v1871 = vlaneseq
    %v1872 = vshrl.u32 %v1871, 7
    %v1873 = vsub.s32 1, %v1872
    %v1874 = vrot.slane %v1865, %v1873
    %v1877 = vpack.c.bf16 %v1870, %v1870
    %v1878 = vpack.c.bf16 %v1874, %v1874
    %1879 = vmatprep.subr.bf16.mxu0 %v731
    %1880 = vmatpush1.bf16.msra.mxu0 %v730
    %1881 = vmatprep.subr.bf16.mxu0 %v729
    %1882 = vmatpush1.bf16.msra.mxu0 %v728
    %1883 = vmatprep.subr.bf16.mxu0 %v727
    %1884 = vmatpush1.bf16.msra.mxu0 %v726
    %1885 = vmatprep.subr.bf16.mxu0 %v725
    %1886 = vmatpush1.bf16.msra.mxu0 %v724
    %1887 = vmatprep.subr.bf16.mxu0 %v723
    %1888 = vmatpush1.bf16.msra.mxu0 %v722
    %1889 = vmatprep.subr.bf16.mxu0 %v721
    %1890 = vmatpush1.bf16.msra.mxu0 %v720
    %1891 = vmatprep.subr.bf16.mxu0 %v719
    %1892 = vmatpush1.bf16.msra.mxu0 %v718
    %1893 = vmatprep.subr.bf16.mxu0 %v717
    %1894 = vmatpush1.bf16.msra.mxu0 %v716
    %1895 = vmatprep.subr.bf16.mxu0 %v747
    %1896 = vmatpush2.bf16.msra.mxu0 %v746
    %1897 = vmatprep.subr.bf16.mxu0 %v745
    %1898 = vmatpush2.bf16.msra.mxu0 %v744
    %1899 = vmatprep.subr.bf16.mxu0 %v743
    %1900 = vmatpush2.bf16.msra.mxu0 %v742
    %1901 = vmatprep.subr.bf16.mxu0 %v741
    %1902 = vmatpush2.bf16.msra.mxu0 %v740
    %1903 = vmatprep.subr.bf16.mxu0 %v739
    %1904 = vmatpush2.bf16.msra.mxu0 %v738
    %1905 = vmatprep.subr.bf16.mxu0 %v737
    %1906 = vmatpush2.bf16.msra.mxu0 %v736
    %1907 = vmatprep.subr.bf16.mxu0 %v735
    %1908 = vmatpush2.bf16.msra.mxu0 %v734
    %1909 = vmatprep.subr.bf16.mxu0 %v733
    %1910 = vmatpush2.bf16.msra.mxu0 %v732
    %1911 = vmatprep.mubr.bf16.mxu0 %v1802
    %1912 = vmatmul.mubr.bf16.gmra.mxu0 %v1801
    %v1913 = vpop.f32.mrf.mxu0
    %v1914 = vadd.f32 0.0, %v1913
    %v1915 = vpop.f32.mrf.mxu0
    %v1916 = vadd.f32 0.0, %v1915
    %v1917 = vpop.f32.mrf.mxu0
    %v1918 = vpop.f32.mrf.mxu0
    %1919 = vdwg.mxu0
    %1920 = vmatprep.subr.bf16.mxu0 %v932
    %1921 = vmatpush1.bf16.msra.mxu0 %v931
    %1922 = vmatprep.subr.bf16.mxu0 %v930
    %1923 = vmatpush1.bf16.msra.mxu0 %v929
    %1924 = vmatprep.subr.bf16.mxu0 %v928
    %1925 = vmatpush1.bf16.msra.mxu0 %v927
    %1926 = vmatprep.subr.bf16.mxu0 %v926
    %1927 = vmatpush1.bf16.msra.mxu0 %v925
    %1928 = vmatprep.subr.bf16.mxu0 %v924
    %1929 = vmatpush1.bf16.msra.mxu0 %v923
    %1930 = vmatprep.subr.bf16.mxu0 %v922
    %1931 = vmatpush1.bf16.msra.mxu0 %v921
    %1932 = vmatprep.subr.bf16.mxu0 %v920
    %1933 = vmatpush1.bf16.msra.mxu0 %v919
    %1934 = vmatprep.subr.bf16.mxu0 %v918
    %1935 = vmatpush1.bf16.msra.mxu0 %v917
    %1936 = vmatprep.subr.bf16.mxu0 %v948
    %1937 = vmatpush2.bf16.msra.mxu0 %v947
    %1938 = vmatprep.subr.bf16.mxu0 %v946
    %1939 = vmatpush2.bf16.msra.mxu0 %v945
    %1940 = vmatprep.subr.bf16.mxu0 %v944
    %1941 = vmatpush2.bf16.msra.mxu0 %v943
    %1942 = vmatprep.subr.bf16.mxu0 %v942
    %1943 = vmatpush2.bf16.msra.mxu0 %v941
    %1944 = vmatprep.subr.bf16.mxu0 %v940
    %1945 = vmatpush2.bf16.msra.mxu0 %v939
    %1946 = vmatprep.subr.bf16.mxu0 %v938
    %1947 = vmatpush2.bf16.msra.mxu0 %v937
    %1948 = vmatprep.subr.bf16.mxu0 %v936
    %1949 = vmatpush2.bf16.msra.mxu0 %v935
    %1950 = vmatprep.subr.bf16.mxu0 %v934
    %1951 = vmatpush2.bf16.msra.mxu0 %v933
    %1952 = vmatprep.mubr.bf16.mxu0 %v1878
    %1953 = vmatmul.mubr.bf16.gmra.mxu0 %v1877
    %v1954 = vpop.f32.mrf.mxu0
    %v1955 = vadd.f32 %v1914, %v1954
    %v1956 = vpop.f32.mrf.mxu0
    %v1957 = vadd.f32 %v1916, %v1956
    %v1958 = vpop.f32.mrf.mxu0
    %v1959 = vpop.f32.mrf.mxu0
    %1960 = vdwg.mxu0
    %v1961 = vadd.f32 %v1955, %v1026
    %v1962 = vadd.f32 %v1957, %v1030
    %v1963 = vtanh.pop %v1961
    %v1964 = vtanh.pop %v1962
    %v1967 = vcombine.low %v1963, %v1964
    %v1969 = vunpack.c.l.s4 1966171168
    %v1970 = vunpack.c.0.s8 %v1969
    %v1971 = vlaneseq
    %v1972 = vshrl.u32 %v1971, 7
    %v1973 = vsub.s32 %v1970, %v1972
    %v1974 = vrot.slane %v1967, %v1973
    %v1976 = vunpack.c.l.s4 1966171168
    %v1977 = vunpack.c.0.s8 %v1976
    %v1978 = vlaneseq
    %v1979 = vshrl.u32 %v1978, 7
    %v1980 = vsub.s32 %v1977, %v1979
    %v1981 = vrot.slane %v1974, %v1980
    %s1983 = scalar_lea.vmem [#allocation3], 5
    %1984 = vst.msk [vmem:[%s1983] ss:$8 sm:$0x3] %vm1058, %v1981
    %1985 = vst.msk [vmem:[%s1983] ss:$8 sm:$0x0] %vm1058, %v1981
    %v1986 = vpack.c.bf16 %v1963, %v1963
    %v1987 = vpack.c.bf16 %v1964, %v1964
    %s1988 = scalar_lea.vmem [#allocation2], 6
    %v1989 = vld [vmem:[%s1988] ss:$8 sm:$0x3]
    %1990 = vmatprep.subr.bf16.mxu0 %v497
    %1991 = vmatpush1.bf16.msra.mxu0 %v496
    %1992 = vmatprep.subr.bf16.mxu0 %v495
    %1993 = vmatpush1.bf16.msra.mxu0 %v494
    %1994 = vmatprep.subr.bf16.mxu0 %v493
    %1995 = vmatpush1.bf16.msra.mxu0 %v492
    %1996 = vmatprep.subr.bf16.mxu0 %v491
    %1997 = vmatpush1.bf16.msra.mxu0 %v490
    %1998 = vmatprep.subr.bf16.mxu0 %v489
    %1999 = vmatpush1.bf16.msra.mxu0 %v488
    %2000 = vmatprep.subr.bf16.mxu0 %v487
    %2001 = vmatpush1.bf16.msra.mxu0 %v486
    %2002 = vmatprep.subr.bf16.mxu0 %v485
    %2003 = vmatpush1.bf16.msra.mxu0 %v484
    %2004 = vmatprep.subr.bf16.mxu0 %v483
    %2005 = vmatpush1.bf16.msra.mxu0 %v482
    %2006 = vmatprep.subr.bf16.mxu0 %v513
    %2007 = vmatpush2.bf16.msra.mxu0 %v512
    %2008 = vmatprep.subr.bf16.mxu0 %v511
    %2009 = vmatpush2.bf16.msra.mxu0 %v510
    %2010 = vmatprep.subr.bf16.mxu0 %v509
    %2011 = vmatpush2.bf16.msra.mxu0 %v508
    %2012 = vmatprep.subr.bf16.mxu0 %v507
    %2013 = vmatpush2.bf16.msra.mxu0 %v506
    %2014 = vmatprep.subr.bf16.mxu0 %v505
    %2015 = vmatpush2.bf16.msra.mxu0 %v504
    %2016 = vmatprep.subr.bf16.mxu0 %v503
    %2017 = vmatpush2.bf16.msra.mxu0 %v502
    %2018 = vmatprep.subr.bf16.mxu0 %v501
    %2019 = vmatpush2.bf16.msra.mxu0 %v500
    %2020 = vmatprep.subr.bf16.mxu0 %v499
    %2021 = vmatpush2.bf16.msra.mxu0 %v498
    %2022 = vmatprep.mubr.bf16.mxu0 %v1878
    %2023 = vmatmul.mubr.bf16.gmra.mxu0 %v1877
    %v2024 = vpop.f32.mrf.mxu0
    %v2025 = vadd.f32 0.0, %v2024
    %v2026 = vpop.f32.mrf.mxu0
    %v2027 = vadd.f32 0.0, %v2026
    %v2028 = vpop.f32.mrf.mxu0
    %v2029 = vpop.f32.mrf.mxu0
    %2030 = vdwg.mxu0
    %v2033 = vcombine.low %v2025, %v2027
    %v2035 = vunpack.c.l.s4 1966171168
    %v2036 = vunpack.c.0.s8 %v2035
    %v2037 = vlaneseq
    %v2038 = vshrl.u32 %v2037, 7
    %v2039 = vsub.s32 %v2036, %v2038
    %v2040 = vrot.slane %v2033, %v2039
    %v2042 = vunpack.c.l.s4 1966171168
    %v2043 = vunpack.c.0.s8 %v2042
    %v2044 = vlaneseq
    %v2045 = vshrl.u32 %v2044, 7
    %v2046 = vsub.s32 %v2043, %v2045
    %v2047 = vrot.slane %v2040, %v2046
    %v2049 = vadd.f32 %v1989, %v2047
    %v2050 = vtanh.pop %v2049
    %v2052 = vlaneseq
    %v2053 = vshrl.u32 %v2052, 7
    %v2054 = vsub.s32 0, %v2053
    %v2055 = vrot.slane %v2050, %v2054
    %v2056 = vlaneseq
    %v2057 = vshrl.u32 %v2056, 7
    %v2058 = vsub.s32 1, %v2057
    %v2059 = vrot.slane %v2050, %v2058
    %v2062 = vpack.c.bf16 %v2055, %v2055
    %v2063 = vpack.c.bf16 %v2059, %v2059
    %2064 = vmatprep.subr.bf16.mxu0 %v731
    %2065 = vmatpush1.bf16.msra.mxu0 %v730
    %2066 = vmatprep.subr.bf16.mxu0 %v729
    %2067 = vmatpush1.bf16.msra.mxu0 %v728
    %2068 = vmatprep.subr.bf16.mxu0 %v727
    %2069 = vmatpush1.bf16.msra.mxu0 %v726
    %2070 = vmatprep.subr.bf16.mxu0 %v725
    %2071 = vmatpush1.bf16.msra.mxu0 %v724
    %2072 = vmatprep.subr.bf16.mxu0 %v723
    %2073 = vmatpush1.bf16.msra.mxu0 %v722
    %2074 = vmatprep.subr.bf16.mxu0 %v721
    %2075 = vmatpush1.bf16.msra.mxu0 %v720
    %2076 = vmatprep.subr.bf16.mxu0 %v719
    %2077 = vmatpush1.bf16.msra.mxu0 %v718
    %2078 = vmatprep.subr.bf16.mxu0 %v717
    %2079 = vmatpush1.bf16.msra.mxu0 %v716
    %2080 = vmatprep.subr.bf16.mxu0 %v747
    %2081 = vmatpush2.bf16.msra.mxu0 %v746
    %2082 = vmatprep.subr.bf16.mxu0 %v745
    %2083 = vmatpush2.bf16.msra.mxu0 %v744
    %2084 = vmatprep.subr.bf16.mxu0 %v743
    %2085 = vmatpush2.bf16.msra.mxu0 %v742
    %2086 = vmatprep.subr.bf16.mxu0 %v741
    %2087 = vmatpush2.bf16.msra.mxu0 %v740
    %2088 = vmatprep.subr.bf16.mxu0 %v739
    %2089 = vmatpush2.bf16.msra.mxu0 %v738
    %2090 = vmatprep.subr.bf16.mxu0 %v737
    %2091 = vmatpush2.bf16.msra.mxu0 %v736
    %2092 = vmatprep.subr.bf16.mxu0 %v735
    %2093 = vmatpush2.bf16.msra.mxu0 %v734
    %2094 = vmatprep.subr.bf16.mxu0 %v733
    %2095 = vmatpush2.bf16.msra.mxu0 %v732
    %2096 = vmatprep.mubr.bf16.mxu0 %v1987
    %2097 = vmatmul.mubr.bf16.gmra.mxu0 %v1986
    %v2098 = vpop.f32.mrf.mxu0
    %v2099 = vadd.f32 0.0, %v2098
    %v2100 = vpop.f32.mrf.mxu0
    %v2101 = vadd.f32 0.0, %v2100
    %v2102 = vpop.f32.mrf.mxu0
    %v2103 = vpop.f32.mrf.mxu0
    %2104 = vdwg.mxu0
    %2105 = vmatprep.subr.bf16.mxu0 %v932
    %2106 = vmatpush1.bf16.msra.mxu0 %v931
    %2107 = vmatprep.subr.bf16.mxu0 %v930
    %2108 = vmatpush1.bf16.msra.mxu0 %v929
    %2109 = vmatprep.subr.bf16.mxu0 %v928
    %2110 = vmatpush1.bf16.msra.mxu0 %v927
    %2111 = vmatprep.subr.bf16.mxu0 %v926
    %2112 = vmatpush1.bf16.msra.mxu0 %v925
    %2113 = vmatprep.subr.bf16.mxu0 %v924
    %2114 = vmatpush1.bf16.msra.mxu0 %v923
    %2115 = vmatprep.subr.bf16.mxu0 %v922
    %2116 = vmatpush1.bf16.msra.mxu0 %v921
    %2117 = vmatprep.subr.bf16.mxu0 %v920
    %2118 = vmatpush1.bf16.msra.mxu0 %v919
    %2119 = vmatprep.subr.bf16.mxu0 %v918
    %2120 = vmatpush1.bf16.msra.mxu0 %v917
    %2121 = vmatprep.subr.bf16.mxu0 %v948
    %2122 = vmatpush2.bf16.msra.mxu0 %v947
    %2123 = vmatprep.subr.bf16.mxu0 %v946
    %2124 = vmatpush2.bf16.msra.mxu0 %v945
    %2125 = vmatprep.subr.bf16.mxu0 %v944
    %2126 = vmatpush2.bf16.msra.mxu0 %v943
    %2127 = vmatprep.subr.bf16.mxu0 %v942
    %2128 = vmatpush2.bf16.msra.mxu0 %v941
    %2129 = vmatprep.subr.bf16.mxu0 %v940
    %2130 = vmatpush2.bf16.msra.mxu0 %v939
    %2131 = vmatprep.subr.bf16.mxu0 %v938
    %2132 = vmatpush2.bf16.msra.mxu0 %v937
    %2133 = vmatprep.subr.bf16.mxu0 %v936
    %2134 = vmatpush2.bf16.msra.mxu0 %v935
    %2135 = vmatprep.subr.bf16.mxu0 %v934
    %2136 = vmatpush2.bf16.msra.mxu0 %v933
    %2137 = vmatprep.mubr.bf16.mxu0 %v2063
    %2138 = vmatmul.mubr.bf16.gmra.mxu0 %v2062
    %v2139 = vpop.f32.mrf.mxu0
    %v2140 = vadd.f32 %v2099, %v2139
    %v2141 = vpop.f32.mrf.mxu0
    %v2142 = vadd.f32 %v2101, %v2141
    %v2143 = vpop.f32.mrf.mxu0
    %v2144 = vpop.f32.mrf.mxu0
    %2145 = vdwg.mxu0
    %v2146 = vadd.f32 %v2140, %v1026
    %v2147 = vadd.f32 %v2142, %v1030
    %v2148 = vtanh.pop %v2146
    %v2149 = vtanh.pop %v2147
    %v2152 = vcombine.low %v2148, %v2149
    %v2154 = vunpack.c.l.s4 1966171168
    %v2155 = vunpack.c.0.s8 %v2154
    %v2156 = vlaneseq
    %v2157 = vshrl.u32 %v2156, 7
    %v2158 = vsub.s32 %v2155, %v2157
    %v2159 = vrot.slane %v2152, %v2158
    %v2161 = vunpack.c.l.s4 1966171168
    %v2162 = vunpack.c.0.s8 %v2161
    %v2163 = vlaneseq
    %v2164 = vshrl.u32 %v2163, 7
    %v2165 = vsub.s32 %v2162, %v2164
    %v2166 = vrot.slane %v2159, %v2165
    %s2168 = scalar_lea.vmem [#allocation3], 6
    %2169 = vst.msk [vmem:[%s2168] ss:$8 sm:$0x3] %vm1058, %v2166
    %2170 = vst.msk [vmem:[%s2168] ss:$8 sm:$0x0] %vm1058, %v2166
    %v2171 = vpack.c.bf16 %v2148, %v2148
    %v2172 = vpack.c.bf16 %v2149, %v2149
    %s2173 = scalar_lea.vmem [#allocation2], 7
    %v2174 = vld [vmem:[%s2173] ss:$8 sm:$0x3]
    %2175 = vmatprep.subr.bf16.mxu0 %v497
    %2176 = vmatpush1.bf16.msra.mxu0 %v496
    %2177 = vmatprep.subr.bf16.mxu0 %v495
    %2178 = vmatpush1.bf16.msra.mxu0 %v494
    %2179 = vmatprep.subr.bf16.mxu0 %v493
    %2180 = vmatpush1.bf16.msra.mxu0 %v492
    %2181 = vmatprep.subr.bf16.mxu0 %v491
    %2182 = vmatpush1.bf16.msra.mxu0 %v490
    %2183 = vmatprep.subr.bf16.mxu0 %v489
    %2184 = vmatpush1.bf16.msra.mxu0 %v488
    %2185 = vmatprep.subr.bf16.mxu0 %v487
    %2186 = vmatpush1.bf16.msra.mxu0 %v486
    %2187 = vmatprep.subr.bf16.mxu0 %v485
    %2188 = vmatpush1.bf16.msra.mxu0 %v484
    %2189 = vmatprep.subr.bf16.mxu0 %v483
    %2190 = vmatpush1.bf16.msra.mxu0 %v482
    %2191 = vmatprep.subr.bf16.mxu0 %v513
    %2192 = vmatpush2.bf16.msra.mxu0 %v512
    %2193 = vmatprep.subr.bf16.mxu0 %v511
    %2194 = vmatpush2.bf16.msra.mxu0 %v510
    %2195 = vmatprep.subr.bf16.mxu0 %v509
    %2196 = vmatpush2.bf16.msra.mxu0 %v508
    %2197 = vmatprep.subr.bf16.mxu0 %v507
    %2198 = vmatpush2.bf16.msra.mxu0 %v506
    %2199 = vmatprep.subr.bf16.mxu0 %v505
    %2200 = vmatpush2.bf16.msra.mxu0 %v504
    %2201 = vmatprep.subr.bf16.mxu0 %v503
    %2202 = vmatpush2.bf16.msra.mxu0 %v502
    %2203 = vmatprep.subr.bf16.mxu0 %v501
    %2204 = vmatpush2.bf16.msra.mxu0 %v500
    %2205 = vmatprep.subr.bf16.mxu0 %v499
    %2206 = vmatpush2.bf16.msra.mxu0 %v498
    %2207 = vmatprep.mubr.bf16.mxu0 %v2063
    %2208 = vmatmul.mubr.bf16.gmra.mxu0 %v2062
    %v2209 = vpop.f32.mrf.mxu0
    %v2210 = vadd.f32 0.0, %v2209
    %v2211 = vpop.f32.mrf.mxu0
    %v2212 = vadd.f32 0.0, %v2211
    %v2213 = vpop.f32.mrf.mxu0
    %v2214 = vpop.f32.mrf.mxu0
    %2215 = vdwg.mxu0
    %v2218 = vcombine.low %v2210, %v2212
    %v2220 = vunpack.c.l.s4 1966171168
    %v2221 = vunpack.c.0.s8 %v2220
    %v2222 = vlaneseq
    %v2223 = vshrl.u32 %v2222, 7
    %v2224 = vsub.s32 %v2221, %v2223
    %v2225 = vrot.slane %v2218, %v2224
    %v2227 = vunpack.c.l.s4 1966171168
    %v2228 = vunpack.c.0.s8 %v2227
    %v2229 = vlaneseq
    %v2230 = vshrl.u32 %v2229, 7
    %v2231 = vsub.s32 %v2228, %v2230
    %v2232 = vrot.slane %v2225, %v2231
    %v2234 = vadd.f32 %v2174, %v2232
    %v2235 = vtanh.pop %v2234
    %v2237 = vlaneseq
    %v2238 = vshrl.u32 %v2237, 7
    %v2239 = vsub.s32 0, %v2238
    %v2240 = vrot.slane %v2235, %v2239
    %v2241 = vlaneseq
    %v2242 = vshrl.u32 %v2241, 7
    %v2243 = vsub.s32 1, %v2242
    %v2244 = vrot.slane %v2235, %v2243
    %v2247 = vpack.c.bf16 %v2240, %v2240
    %v2248 = vpack.c.bf16 %v2244, %v2244
    %2249 = vmatprep.subr.bf16.mxu0 %v731
    %2250 = vmatpush1.bf16.msra.mxu0 %v730
    %2251 = vmatprep.subr.bf16.mxu0 %v729
    %2252 = vmatpush1.bf16.msra.mxu0 %v728
    %2253 = vmatprep.subr.bf16.mxu0 %v727
    %2254 = vmatpush1.bf16.msra.mxu0 %v726
    %2255 = vmatprep.subr.bf16.mxu0 %v725
    %2256 = vmatpush1.bf16.msra.mxu0 %v724
    %2257 = vmatprep.subr.bf16.mxu0 %v723
    %2258 = vmatpush1.bf16.msra.mxu0 %v722
    %2259 = vmatprep.subr.bf16.mxu0 %v721
    %2260 = vmatpush1.bf16.msra.mxu0 %v720
    %2261 = vmatprep.subr.bf16.mxu0 %v719
    %2262 = vmatpush1.bf16.msra.mxu0 %v718
    %2263 = vmatprep.subr.bf16.mxu0 %v717
    %2264 = vmatpush1.bf16.msra.mxu0 %v716
    %2265 = vmatprep.subr.bf16.mxu0 %v747
    %2266 = vmatpush2.bf16.msra.mxu0 %v746
    %2267 = vmatprep.subr.bf16.mxu0 %v745
    %2268 = vmatpush2.bf16.msra.mxu0 %v744
    %2269 = vmatprep.subr.bf16.mxu0 %v743
    %2270 = vmatpush2.bf16.msra.mxu0 %v742
    %2271 = vmatprep.subr.bf16.mxu0 %v741
    %2272 = vmatpush2.bf16.msra.mxu0 %v740
    %2273 = vmatprep.subr.bf16.mxu0 %v739
    %2274 = vmatpush2.bf16.msra.mxu0 %v738
    %2275 = vmatprep.subr.bf16.mxu0 %v737
    %2276 = vmatpush2.bf16.msra.mxu0 %v736
    %2277 = vmatprep.subr.bf16.mxu0 %v735
    %2278 = vmatpush2.bf16.msra.mxu0 %v734
    %2279 = vmatprep.subr.bf16.mxu0 %v733
    %2280 = vmatpush2.bf16.msra.mxu0 %v732
    %2281 = vmatprep.mubr.bf16.mxu0 %v2172
    %2282 = vmatmul.mubr.bf16.gmra.mxu0 %v2171
    %v2283 = vpop.f32.mrf.mxu0
    %v2284 = vadd.f32 0.0, %v2283
    %v2285 = vpop.f32.mrf.mxu0
    %v2286 = vadd.f32 0.0, %v2285
    %v2287 = vpop.f32.mrf.mxu0
    %v2288 = vpop.f32.mrf.mxu0
    %2289 = vdwg.mxu0
    %2290 = vmatprep.subr.bf16.mxu0 %v932
    %2291 = vmatpush1.bf16.msra.mxu0 %v931
    %2292 = vmatprep.subr.bf16.mxu0 %v930
    %2293 = vmatpush1.bf16.msra.mxu0 %v929
    %2294 = vmatprep.subr.bf16.mxu0 %v928
    %2295 = vmatpush1.bf16.msra.mxu0 %v927
    %2296 = vmatprep.subr.bf16.mxu0 %v926
    %2297 = vmatpush1.bf16.msra.mxu0 %v925
    %2298 = vmatprep.subr.bf16.mxu0 %v924
    %2299 = vmatpush1.bf16.msra.mxu0 %v923
    %2300 = vmatprep.subr.bf16.mxu0 %v922
    %2301 = vmatpush1.bf16.msra.mxu0 %v921
    %2302 = vmatprep.subr.bf16.mxu0 %v920
    %2303 = vmatpush1.bf16.msra.mxu0 %v919
    %2304 = vmatprep.subr.bf16.mxu0 %v918
    %2305 = vmatpush1.bf16.msra.mxu0 %v917
    %2306 = vmatprep.subr.bf16.mxu0 %v948
    %2307 = vmatpush2.bf16.msra.mxu0 %v947
    %2308 = vmatprep.subr.bf16.mxu0 %v946
    %2309 = vmatpush2.bf16.msra.mxu0 %v945
    %2310 = vmatprep.subr.bf16.mxu0 %v944
    %2311 = vmatpush2.bf16.msra.mxu0 %v943
    %2312 = vmatprep.subr.bf16.mxu0 %v942
    %2313 = vmatpush2.bf16.msra.mxu0 %v941
    %2314 = vmatprep.subr.bf16.mxu0 %v940
    %2315 = vmatpush2.bf16.msra.mxu0 %v939
    %2316 = vmatprep.subr.bf16.mxu0 %v938
    %2317 = vmatpush2.bf16.msra.mxu0 %v937
    %2318 = vmatprep.subr.bf16.mxu0 %v936
    %2319 = vmatpush2.bf16.msra.mxu0 %v935
    %2320 = vmatprep.subr.bf16.mxu0 %v934
    %2321 = vmatpush2.bf16.msra.mxu0 %v933
    %2322 = vmatprep.mubr.bf16.mxu0 %v2248
    %2323 = vmatmul.mubr.bf16.gmra.mxu0 %v2247
    %v2324 = vpop.f32.mrf.mxu0
    %v2325 = vadd.f32 %v2284, %v2324
    %v2326 = vpop.f32.mrf.mxu0
    %v2327 = vadd.f32 %v2286, %v2326
    %v2328 = vpop.f32.mrf.mxu0
    %v2329 = vpop.f32.mrf.mxu0
    %2330 = vdwg.mxu0
    %v2331 = vadd.f32 %v2325, %v1026
    %v2332 = vadd.f32 %v2327, %v1030
    %v2333 = vtanh.pop %v2331
    %v2334 = vtanh.pop %v2332
    %v2337 = vcombine.low %v2333, %v2334
    %v2339 = vunpack.c.l.s4 1966171168
    %v2340 = vunpack.c.0.s8 %v2339
    %v2341 = vlaneseq
    %v2342 = vshrl.u32 %v2341, 7
    %v2343 = vsub.s32 %v2340, %v2342
    %v2344 = vrot.slane %v2337, %v2343
    %v2346 = vunpack.c.l.s4 1966171168
    %v2347 = vunpack.c.0.s8 %v2346
    %v2348 = vlaneseq
    %v2349 = vshrl.u32 %v2348, 7
    %v2350 = vsub.s32 %v2347, %v2349
    %v2351 = vrot.slane %v2344, %v2350
    %s2353 = scalar_lea.vmem [#allocation3], 7
    %2354 = vst.msk [vmem:[%s2353] ss:$8 sm:$0x3] %vm1058, %v2351
    %2355 = vst.msk [vmem:[%s2353] ss:$8 sm:$0x0] %vm1058, %v2351
    %v2356 = vpack.c.bf16 %v2333, %v2333
    %v2357 = vpack.c.bf16 %v2334, %v2334
    %v2358 = vld [vmem:[#allocation3] sm:$0xff]
    %v2359 = vld [vmem:[#allocation3 + $0x8] sm:$0xff]
    %v2360 = vpack.c.bf16 %v2358, %v2358
    %v2361 = vpack.c.bf16 %v2359, %v2359
    %v2362 = vld [vmem:[#allocation10] sm:$0xf]
    %v2363 = vld [vmem:[#allocation10 + $0x4] sm:$0xf]
    %v2364 = vld [vmem:[#allocation10 + $0x8] sm:$0xf]
    %v2365 = vld [vmem:[#allocation10 + $0xc] sm:$0xf]
    %v2366 = vld [vmem:[#allocation10 + $0x10] sm:$0xf]
    %v2367 = vld [vmem:[#allocation10 + $0x14] sm:$0xf]
    %v2368 = vld [vmem:[#allocation10 + $0x18] sm:$0xf]
    %v2369 = vld [vmem:[#allocation10 + $0x1c] sm:$0xf]
    %v2370 = vld [vmem:[#allocation10 + $0x20] sm:$0xf]
    %v2371 = vld [vmem:[#allocation10 + $0x24] sm:$0xf]
    %v2372 = vld [vmem:[#allocation10 + $0x28] sm:$0xf]
    %v2373 = vld [vmem:[#allocation10 + $0x2c] sm:$0xf]
    %v2374 = vld [vmem:[#allocation10 + $0x30] sm:$0xf]
    %v2375 = vld [vmem:[#allocation10 + $0x34] sm:$0xf]
    %v2376 = vld [vmem:[#allocation10 + $0x38] sm:$0xf]
    %v2377 = vld [vmem:[#allocation10 + $0x3c] sm:$0xf]
    %v2378 = vld [vmem:[#allocation10 + $0x40] sm:$0xf]
    %v2379 = vld [vmem:[#allocation10 + $0x44] sm:$0xf]
    %v2380 = vld [vmem:[#allocation10 + $0x48] sm:$0xf]
    %v2381 = vld [vmem:[#allocation10 + $0x4c] sm:$0xf]
    %v2382 = vld [vmem:[#allocation10 + $0x50] sm:$0xf]
    %v2383 = vld [vmem:[#allocation10 + $0x54] sm:$0xf]
    %v2384 = vld [vmem:[#allocation10 + $0x58] sm:$0xf]
    %v2385 = vld [vmem:[#allocation10 + $0x5c] sm:$0xf]
    %v2386 = vld [vmem:[#allocation10 + $0x60] sm:$0xf]
    %v2387 = vld [vmem:[#allocation10 + $0x64] sm:$0xf]
    %v2388 = vld [vmem:[#allocation10 + $0x68] sm:$0xf]
    %v2389 = vld [vmem:[#allocation10 + $0x6c] sm:$0xf]
    %v2390 = vld [vmem:[#allocation10 + $0x70] sm:$0xf]
    %v2391 = vld [vmem:[#allocation10 + $0x74] sm:$0xf]
    %v2392 = vld [vmem:[#allocation10 + $0x78] sm:$0xf]
    %v2393 = vld [vmem:[#allocation10 + $0x7c] sm:$0xf]
    %v2394 = vld [vmem:[#allocation12] sm:$0x1]
    %v2396 = vlaneseq
    %v2397 = vshrl.u32 %v2396, 7
    %v2398 = vsub.s32 0, %v2397
    %v2399 = vrot.slane %v2394, %v2398
    %v2433 = vunpack.c.l.b16 %v2362
    %v2434 = vunpack.c.l.b16 %v2363
    %v2435 = vunpack.c.l.b16 %v2364
    %v2436 = vunpack.c.l.b16 %v2365
    %v2437 = vunpack.c.l.b16 %v2366
    %v2438 = vunpack.c.l.b16 %v2367
    %v2439 = vunpack.c.l.b16 %v2368
    %v2440 = vunpack.c.l.b16 %v2369
    %v2441 = vunpack.c.l.b16 %v2370
    %v2442 = vunpack.c.l.b16 %v2371
    %v2443 = vunpack.c.l.b16 %v2372
    %v2444 = vunpack.c.l.b16 %v2373
    %v2445 = vunpack.c.l.b16 %v2374
    %v2446 = vunpack.c.l.b16 %v2375
    %v2447 = vunpack.c.l.b16 %v2376
    %v2448 = vunpack.c.l.b16 %v2377
    %v2449 = vunpack.c.l.b16 %v2378
    %v2450 = vunpack.c.l.b16 %v2379
    %v2451 = vunpack.c.l.b16 %v2380
    %v2452 = vunpack.c.l.b16 %v2381
    %v2453 = vunpack.c.l.b16 %v2382
    %v2454 = vunpack.c.l.b16 %v2383
    %v2455 = vunpack.c.l.b16 %v2384
    %v2456 = vunpack.c.l.b16 %v2385
    %v2457 = vunpack.c.l.b16 %v2386
    %v2458 = vunpack.c.l.b16 %v2387
    %v2459 = vunpack.c.l.b16 %v2388
    %v2460 = vunpack.c.l.b16 %v2389
    %v2461 = vunpack.c.l.b16 %v2390
    %v2462 = vunpack.c.l.b16 %v2391
    %v2463 = vunpack.c.l.b16 %v2392
    %v2464 = vunpack.c.l.b16 %v2393
    %v2465 = vpack.c.b16 %v2434, %v2433
    %v2466 = vpack.c.b16 %v2436, %v2435
    %v2467 = vpack.c.b16 %v2438, %v2437
    %v2468 = vpack.c.b16 %v2440, %v2439
    %v2469 = vpack.c.b16 %v2442, %v2441
    %v2470 = vpack.c.b16 %v2444, %v2443
    %v2471 = vpack.c.b16 %v2446, %v2445
    %v2472 = vpack.c.b16 %v2448, %v2447
    %v2473 = vpack.c.b16 %v2450, %v2449
    %v2474 = vpack.c.b16 %v2452, %v2451
    %v2475 = vpack.c.b16 %v2454, %v2453
    %v2476 = vpack.c.b16 %v2456, %v2455
    %v2477 = vpack.c.b16 %v2458, %v2457
    %v2478 = vpack.c.b16 %v2460, %v2459
    %v2479 = vpack.c.b16 %v2462, %v2461
    %v2480 = vpack.c.b16 %v2464, %v2463
    %2497 = vmatprep.subr.bf16.mxu0 0
    %2498 = vmatpush1.bf16.msra.mxu0 %v2472
    %2499 = vmatprep.subr.bf16.mxu0 0
    %2500 = vmatpush1.bf16.msra.mxu0 %v2471
    %2501 = vmatprep.subr.bf16.mxu0 0
    %2502 = vmatpush1.bf16.msra.mxu0 %v2470
    %2503 = vmatprep.subr.bf16.mxu0 0
    %2504 = vmatpush1.bf16.msra.mxu0 %v2469
    %2505 = vmatprep.subr.bf16.mxu0 0
    %2506 = vmatpush1.bf16.msra.mxu0 %v2468
    %2507 = vmatprep.subr.bf16.mxu0 0
    %2508 = vmatpush1.bf16.msra.mxu0 %v2467
    %2509 = vmatprep.subr.bf16.mxu0 0
    %2510 = vmatpush1.bf16.msra.mxu0 %v2466
    %2511 = vmatprep.subr.bf16.mxu0 0
    %2512 = vmatpush1.bf16.msra.mxu0 %v2465
    %2513 = vmatprep.subr.bf16.mxu0 0
    %2514 = vmatpush2.bf16.msra.mxu0 %v2480
    %2515 = vmatprep.subr.bf16.mxu0 0
    %2516 = vmatpush2.bf16.msra.mxu0 %v2479
    %2517 = vmatprep.subr.bf16.mxu0 0
    %2518 = vmatpush2.bf16.msra.mxu0 %v2478
    %2519 = vmatprep.subr.bf16.mxu0 0
    %2520 = vmatpush2.bf16.msra.mxu0 %v2477
    %2521 = vmatprep.subr.bf16.mxu0 0
    %2522 = vmatpush2.bf16.msra.mxu0 %v2476
    %2523 = vmatprep.subr.bf16.mxu0 0
    %2524 = vmatpush2.bf16.msra.mxu0 %v2475
    %2525 = vmatprep.subr.bf16.mxu0 0
    %2526 = vmatpush2.bf16.msra.mxu0 %v2474
    %2527 = vmatprep.subr.bf16.mxu0 0
    %2528 = vmatpush2.bf16.msra.mxu0 %v2473
    %2529 = vmatprep.mubr.bf16.mxu0 %v2361
    %2530 = vmatmul.mubr.bf16.gmra.mxu0 %v2360
    %v2531 = vpop.f32.mrf.mxu0
    %v2532 = vadd.f32 %v2399, %v2531
    %v2533 = vpop.f32.mrf.mxu0
    %v2534 = vpop.f32.mrf.mxu0
    %v2535 = vpop.f32.mrf.mxu0
    %2536 = vdwg.mxu0
    %2537 = vst [vmem:[#allocation13] sm:$0xff] %v2532
    %v2538 = vunpack.c.l.bf16 %v2247
    %v2539 = vunpack.c.l.bf16 %v2248
    %v2542 = vcombine.low %v2538, %v2539
    %v2544 = vunpack.c.l.s4 1966171168
    %v2545 = vunpack.c.0.s8 %v2544
    %v2546 = vlaneseq
    %v2547 = vshrl.u32 %v2546, 7
    %v2548 = vsub.s32 %v2545, %v2547
    %v2549 = vrot.slane %v2542, %v2548
    %v2551 = vunpack.c.l.s4 1966171168
    %v2552 = vunpack.c.0.s8 %v2551
    %v2553 = vlaneseq
    %v2554 = vshrl.u32 %v2553, 7
    %v2555 = vsub.s32 %v2552, %v2554
    %v2556 = vrot.slane %v2549, %v2555
    %2558 = vst.msk [vmem:[#allocation14] ss:$2 sm:$0x3] %vm1058, %v2556
    %v2559 = vunpack.c.l.bf16 %v2356
    %v2560 = vunpack.c.l.bf16 %v2357
    %v2563 = vcombine.low %v2559, %v2560
    %v2565 = vunpack.c.l.s4 1966171168
    %v2566 = vunpack.c.0.s8 %v2565
    %v2567 = vlaneseq
    %v2568 = vshrl.u32 %v2567, 7
    %v2569 = vsub.s32 %v2566, %v2568
    %v2570 = vrot.slane %v2563, %v2569
    %v2572 = vunpack.c.l.s4 1966171168
    %v2573 = vunpack.c.0.s8 %v2572
    %v2574 = vlaneseq
    %v2575 = vshrl.u32 %v2574, 7
    %v2576 = vsub.s32 %v2573, %v2575
    %v2577 = vrot.slane %v2570, %v2576
    %s2579 = scalar_lea.vmem [#allocation14], 1
    %2580 = vst.msk [vmem:[%s2579] ss:$2 sm:$0x3] %vm1058, %v2577
    // Predicated region
    $region62: #{rnn_state_forward.1} parent=1 // pred_check
      _
    $region63: #{rnn_state_forward.1} parent=1 // pred_check_branch
      %2582 = sbr.rel (0) target = $region65
    $region64: #{rnn_state_forward.1} parent=1 // pred_region
      %s2584 = ssub.s32 128, 128
      %2585 = vsyncadd [#allocation6], %s2584
      %s2587 = sshll.u32 [#allocation13], 4
      %s2588 = int_to_ptr.vmem [resolvable:$true] %s2587
      %2590 = dma.vmem_to_hbm [thread:$0]  %s2588, 128, %s10, [#allocation6]
    $region65: #{rnn_state_forward.1} parent=1 // pred_fallthru
      _
    // Predicated region
    $region66: #{rnn_state_forward.1} parent=1 // pred_check
      _
    $region67: #{rnn_state_forward.1} parent=1 // pred_check_branch
      %2592 = sbr.rel (0) target = $region69
    $region68: #{rnn_state_forward.1} parent=1 // pred_region
      %s2594 = ssub.s32 64, 64
      %2595 = vsyncadd [#allocation15], %s2594
      %s2597 = sshll.u32 [#allocation14], 4
      %s2598 = int_to_ptr.vmem [resolvable:$true] %s2597
      %2600 = dma.vmem_to_hbm [thread:$0]  %s2598, 64, %s11, [#allocation15]
    $region69: #{rnn_state_forward.1} parent=1 // pred_fallthru
      _
    // Predicated region
    $region70: #{rnn_state_forward.1} parent=1 // pred_check
      _
    $region71: #{rnn_state_forward.1} parent=1 // pred_check_branch
      %2602 = sbr.rel (0) target = $region73
    $region72: #{rnn_state_forward.1} parent=1 // pred_region
      %2603 = dma.done [#allocation6], 128
    $region73: #{rnn_state_forward.1} parent=1 // pred_fallthru
      _
    // Predicated region
    $region74: #{rnn_state_forward.1} parent=1 // pred_check
      _
    $region75: #{rnn_state_forward.1} parent=1 // pred_check_branch
      %2605 = sbr.rel (0) target = $region77
    $region76: #{rnn_state_forward.1} parent=1 // pred_region
      %2606 = dma.done [#allocation15], 64
    $region77: #{rnn_state_forward.1} parent=1 // pred_fallthru
      _
    %2607 = vsyncpa [#allocation5], 1
    %2608 = vsyncpa [#allocation8], 1
    %2609 = vsyncpa [#allocation11], 1
    %2610 = vsyncpa [#allocation6], 1
    %2611 = vsyncpa [#allocation15], 1

</llo_original>
